<compile_context>
chip_gen: v6e
topology: v6e:2x2x1
jax: 0.10.0
libtpu: 0.0.40
codegen_flags: <defaults>
</compile_context>

<pallas_src>
import functools

import jax
import jax.numpy as jnp
from jax.experimental import pallas as pl
from jax.experimental.pallas import tpu as pltpu

HEAD_PAD = 128   # fused (value | action) head width, lane-dense
LANE = 128


def _round_up(n, m):
    return ((n + m - 1) // m) * m


def _mlp_kernel(x_ref, w1_ref, b1_ref, w2_ref, b2_ref, wh_ref, bh_ref,
                head_ref):
    # entry: Linear + ReLU   (bf16 operands, f32 accumulation, f32 elementwise)
    x = x_ref[...].astype(jnp.bfloat16)                              # (TB, D_in)
    h1 = jnp.dot(x, w1_ref[...], preferred_element_type=jnp.float32) + b1_ref[...]
    h1 = jnp.maximum(h1, 0.0).astype(jnp.bfloat16)                   # (TB, H)
    # hidden: Linear + ReLU
    h2 = jnp.dot(h1, w2_ref[...], preferred_element_type=jnp.float32) + b2_ref[...]
    h2 = jnp.maximum(h2, 0.0).astype(jnp.bfloat16)                   # (TB, H)
    # fused heads: col 0 = value, cols 1..1+act_dim = action, rest zero padding.
    # Lane-dense (TB, 128) output -> unmasked full-width stores.
    head_ref[...] = (
        jnp.dot(h2, wh_ref[...], preferred_element_type=jnp.float32) + bh_ref[...]
    )
    # TODO(synk): BatchNorm1d / Dropout / (Log)Softmax branches of the PyTorch
    # module are disabled in this forward config (batch_norm=False, dropout=False).


def pack_params(params, input_dim, action_dim):
    """One-time repack: fuse value/action heads, cast matmul weights to bf16.

    Weights keep their logical hidden width (no HBM zero-padding); only the
    fused head output axis is lane-padded to 128.
    """
    w1, b1, w2, b2, wa, ba, wv, bv = params
    hidden = w1.shape[1]

    # fuse value (col 0) and action (cols 1..1+act_dim) heads, lane-pad to 128
    whp = jnp.zeros((hidden, HEAD_PAD), jnp.float32)
    whp = whp.at[:, 0:1].set(wv)
    whp = whp.at[:, 1:1 + action_dim].set(wa)
    bhp = jnp.zeros((1, HEAD_PAD), jnp.float32)
    bhp = bhp.at[:, 0:1].set(bv)
    bhp = bhp.at[:, 1:1 + action_dim].set(ba)

    return (
        w1.astype(jnp.bfloat16), b1,                 # biases stay f32
        w2.astype(jnp.bfloat16), b2,
        whp.astype(jnp.bfloat16), bhp,
    )


@functools.partial(jax.jit, static_argnames=("action_dim",))
def model_forward(x, packed, *, action_dim):
    """Returns (value, action) like Model.forward(x, requires_value=True)."""
    w1, b1, w2, b2, wh, bh = packed
    B, d_in = x.shape
    hidden = w1.shape[1]

    # batch tile: multiple of 16 (bf16 sublane packing), capped at 128
    TB = min(128, _round_up(B, 16))
    B_pad = _round_up(B, TB)
    if B_pad != B:
        x = jnp.pad(x, ((0, B_pad - B), (0, 0)))
    grid = (B_pad // TB,)

    # Weights/biases map to the same block on every grid step -> DMA'd once,
    # VMEM-resident; x/head tiles stream with automatic double-buffering.
    head = pl.pallas_call(
        _mlp_kernel,
        out_shape=jax.ShapeDtypeStruct((B_pad, HEAD_PAD), jnp.float32),
        grid=grid,
        in_specs=[
            pl.BlockSpec((TB, d_in), lambda i: (i, 0)),          # x (streamed)
            pl.BlockSpec((d_in, hidden), lambda i: (0, 0)),      # w1 (resident)
            pl.BlockSpec((1, hidden), lambda i: (0, 0)),         # b1
            pl.BlockSpec((hidden, hidden), lambda i: (0, 0)),    # w2
            pl.BlockSpec((1, hidden), lambda i: (0, 0)),         # b2
            pl.BlockSpec((hidden, HEAD_PAD), lambda i: (0, 0)),  # fused head W
            pl.BlockSpec((1, HEAD_PAD), lambda i: (0, 0)),       # fused head b
        ],
        out_specs=pl.BlockSpec((TB, HEAD_PAD), lambda i: (i, 0)),
        compiler_params=pltpu.CompilerParams(
            dimension_semantics=("parallel",)),                  # v7x: 2 TCs
    )(x, w1, b1, w2, b2, wh, bh)

    head = head[:B]
    value = head[:, 0:1]
    action = head[:, 1:1 + action_dim]
    return value, action


def init_params(key, input_dim, action_dim):
    """Deterministic PyTorch-style (uniform +-1/sqrt(fan_in)) init, f32."""
    hidden_dim = action_dim * 100
    ks = jax.random.split(key, 8)

    def lin(kw, kb, fan_in, fan_out):
        bound = 1.0 / jnp.sqrt(jnp.float32(fan_in))
        w = jax.random.uniform(kw, (fan_in, fan_out), jnp.float32, -bound, bound)
        b = jax.random.uniform(kb, (1, fan_out), jnp.float32, -bound, bound)
        return w, b

    w1, b1 = lin(ks[0], ks[1], input_dim, hidden_dim)
    w2, b2 = lin(ks[2], ks[3], hidden_dim, hidden_dim)
    wa, ba = lin(ks[4], ks[5], hidden_dim, action_dim)
    wv, bv = lin(ks[6], ks[7], hidden_dim, 1)
    return (w1, b1, w2, b2, wa, ba, wv, bv)


if __name__ == "__main__":
    input_dim = 32
    action_dim = 4          # hidden_dim = action_dim * 100 = 400
    batch = 256             # stacked rows -> 2 grid steps of TB=128

    key = jax.random.PRNGKey(0)
    k_x, k_p = jax.random.split(key)
    x = jax.random.normal(k_x, (batch, input_dim), jnp.float32)
    params = init_params(k_p, input_dim, action_dim)
    packed = pack_params(params, input_dim, action_dim)

    value, action = model_forward(x, packed, action_dim=action_dim)
    jax.block_until_ready((value, action))

    # --- reference 1: same bf16 operand / f32 accumulate path (tight check) ---
    w1, b1, w2, b2, wa, ba, wv, bv = params
    xb = x.astype(jnp.bfloat16)
    h1 = jnp.dot(xb, w1.astype(jnp.bfloat16),
                 preferred_element_type=jnp.float32) + b1
    h1 = jnp.maximum(h1, 0.0).astype(jnp.bfloat16)
    h2 = jnp.dot(h1, w2.astype(jnp.bfloat16),
                 preferred_element_type=jnp.float32) + b2
    h2 = jnp.maximum(h2, 0.0).astype(jnp.bfloat16)
    action_ref = jnp.dot(h2, wa.astype(jnp.bfloat16),
                         preferred_element_type=jnp.float32) + ba
    value_ref = jnp.dot(h2, wv.astype(jnp.bfloat16),
                        preferred_element_type=jnp.float32) + bv
    assert jnp.allclose(action, action_ref, atol=2e-3), "action mismatch (bf16 ref)"
    assert jnp.allclose(value, value_ref, atol=2e-3), "value mismatch (bf16 ref)"

    # --- reference 2: pure f32 PyTorch-equivalent math (loose check) ---
    h1f = jnp.maximum(x @ w1 + b1, 0.0)
    h2f = jnp.maximum(h1f @ w2 + b2, 0.0)
    assert jnp.allclose(action, h2f @ wa + ba, atol=5e-2), "action mismatch (f32 ref)"
    assert jnp.allclose(value, h2f @ wv + bv, atol=5e-2), "value mismatch (f32 ref)"

    assert value.shape == (batch, 1) and action.shape == (batch, action_dim)
    print("KERNEL_OK")
</pallas_src>

<mosaic_0001>
module attributes {stable_mosaic.version = 11 : i64} {
  func.func @_mlp_kernel(%arg0: i32, %arg1: memref<128x32xf32, #tpu.memory_space<vmem>>, %arg2: memref<32x400xbf16, #tpu.memory_space<vmem>>, %arg3: memref<1x400xf32, #tpu.memory_space<vmem>>, %arg4: memref<400x400xbf16, #tpu.memory_space<vmem>>, %arg5: memref<1x400xf32, #tpu.memory_space<vmem>>, %arg6: memref<400x128xbf16, #tpu.memory_space<vmem>>, %arg7: memref<1x128xf32, #tpu.memory_space<vmem>>, %arg8: memref<128x128xf32, #tpu.memory_space<vmem>>) attributes {dimension_semantics = [#tpu.dimension_semantics<parallel>], iteration_bounds = array<i64: 2>, scalar_prefetch = 0 : i64, scratch_operands = 0 : i64, tpu.core_type = #tpu.core_type<tc>, window_params = [{transform_indices = @transform_0, window_bounds = array<i64: 128, 32>}, {pipeline_mode = #tpu.pipeline_mode<synchronous>, transform_indices = @transform_1, window_bounds = array<i64: 32, 400>}, {pipeline_mode = #tpu.pipeline_mode<synchronous>, transform_indices = @transform_2, window_bounds = array<i64: 1, 400>}, {pipeline_mode = #tpu.pipeline_mode<synchronous>, transform_indices = @transform_3, window_bounds = array<i64: 400, 400>}, {pipeline_mode = #tpu.pipeline_mode<synchronous>, transform_indices = @transform_4, window_bounds = array<i64: 1, 400>}, {pipeline_mode = #tpu.pipeline_mode<synchronous>, transform_indices = @transform_5, window_bounds = array<i64: 400, 128>}, {pipeline_mode = #tpu.pipeline_mode<synchronous>, transform_indices = @transform_6, window_bounds = array<i64: 1, 128>}, {transform_indices = @transform_7, window_bounds = array<i64: 128, 128>}]} {
    %c0 = arith.constant 0 : index
    %c0_0 = arith.constant 0 : index
    %0 = vector.load %arg1[%c0, %c0_0] : memref<128x32xf32, #tpu.memory_space<vmem>>, vector<128x32xf32>
    %1 = arith.truncf %0 : vector<128x32xf32> to vector<128x32xbf16>
    %c0_1 = arith.constant 0 : index
    %c0_2 = arith.constant 0 : index
    %2 = vector.load %arg2[%c0_1, %c0_2] : memref<32x400xbf16, #tpu.memory_space<vmem>>, vector<32x400xbf16>
    %cst = arith.constant dense<0.000000e+00> : vector<128x400xf32>
    %3 = tpu.matmul %1, %2, %cst {dimension_numbers = #tpu.dot_dimension_numbers<[1], [0], [0], [1], [0, 0, 1, 1], [], []>} : vector<128x32xbf16>, vector<32x400xbf16>, vector<128x400xf32> -> vector<128x400xf32>
    %c0_3 = arith.constant 0 : index
    %c0_4 = arith.constant 0 : index
    %4 = vector.load %arg3[%c0_3, %c0_4] : memref<1x400xf32, #tpu.memory_space<vmem>>, vector<1x400xf32>
    %5 = vector.broadcast %4 : vector<1x400xf32> to vector<128x400xf32>
    %6 = arith.addf %3, %5 : vector<128x400xf32>
    %cst_5 = arith.constant 0.000000e+00 : f32
    %7 = vector.broadcast %cst_5 : f32 to vector<128x400xf32>
    %8 = arith.maximumf %6, %7 : vector<128x400xf32>
    %9 = arith.truncf %8 : vector<128x400xf32> to vector<128x400xbf16>
    %c0_6 = arith.constant 0 : index
    %c0_7 = arith.constant 0 : index
    %10 = vector.load %arg4[%c0_6, %c0_7] : memref<400x400xbf16, #tpu.memory_space<vmem>>, vector<400x400xbf16>
    %cst_8 = arith.constant dense<0.000000e+00> : vector<128x400xf32>
    %11 = tpu.matmul %9, %10, %cst_8 {dimension_numbers = #tpu.dot_dimension_numbers<[1], [0], [0], [1], [0, 0, 1, 1], [], []>} : vector<128x400xbf16>, vector<400x400xbf16>, vector<128x400xf32> -> vector<128x400xf32>
    %c0_9 = arith.constant 0 : index
    %c0_10 = arith.constant 0 : index
    %12 = vector.load %arg5[%c0_9, %c0_10] : memref<1x400xf32, #tpu.memory_space<vmem>>, vector<1x400xf32>
    %13 = vector.broadcast %12 : vector<1x400xf32> to vector<128x400xf32>
    %14 = arith.addf %11, %13 : vector<128x400xf32>
    %cst_11 = arith.constant 0.000000e+00 : f32
    %15 = vector.broadcast %cst_11 : f32 to vector<128x400xf32>
    %16 = arith.maximumf %14, %15 : vector<128x400xf32>
    %17 = arith.truncf %16 : vector<128x400xf32> to vector<128x400xbf16>
    %c0_12 = arith.constant 0 : index
    %c0_13 = arith.constant 0 : index
    %18 = vector.load %arg6[%c0_12, %c0_13] : memref<400x128xbf16, #tpu.memory_space<vmem>>, vector<400x128xbf16>
    %cst_14 = arith.constant dense<0.000000e+00> : vector<128x128xf32>
    %19 = tpu.matmul %17, %18, %cst_14 {dimension_numbers = #tpu.dot_dimension_numbers<[1], [0], [0], [1], [0, 0, 1, 1], [], []>} : vector<128x400xbf16>, vector<400x128xbf16>, vector<128x128xf32> -> vector<128x128xf32>
    %c0_15 = arith.constant 0 : index
    %c0_16 = arith.constant 0 : index
    %20 = vector.load %arg7[%c0_15, %c0_16] : memref<1x128xf32, #tpu.memory_space<vmem>>, vector<1x128xf32>
    %21 = vector.broadcast %20 : vector<1x128xf32> to vector<128x128xf32>
    %22 = arith.addf %19, %21 : vector<128x128xf32>
    %c0_17 = arith.constant 0 : index
    %c0_18 = arith.constant 0 : index
    %23 = vector.load %arg8[%c0_17, %c0_18] : memref<128x128xf32, #tpu.memory_space<vmem>>, vector<128x128xf32>
    tpu.vector_store %arg8[%c0_17, %c0_18], %22 {strides = array<i32>} : memref<128x128xf32, #tpu.memory_space<vmem>>, vector<128x128xf32>,
    return
  }
  func.func @transform_0(%arg0: i32) -> (i32, i32) {
    %c0_i32 = arith.constant 0 : i32
    %c0_i32_0 = arith.constant 0 : i32
    return %arg0, %c0_i32 : i32, i32
  }
  func.func @transform_1(%arg0: i32) -> (i32, i32) {
    %c0_i32 = arith.constant 0 : i32
    %c0_i32_0 = arith.constant 0 : i32
    %c0_i32_1 = arith.constant 0 : i32
    return %c0_i32, %c0_i32_0 : i32, i32
  }
  func.func @transform_2(%arg0: i32) -> (i32, i32) {
    %c0_i32 = arith.constant 0 : i32
    %c0_i32_0 = arith.constant 0 : i32
    %c0_i32_1 = arith.constant 0 : i32
    return %c0_i32, %c0_i32_0 : i32, i32
  }
  func.func @transform_3(%arg0: i32) -> (i32, i32) {
    %c0_i32 = arith.constant 0 : i32
    %c0_i32_0 = arith.constant 0 : i32
    %c0_i32_1 = arith.constant 0 : i32
    return %c0_i32, %c0_i32_0 : i32, i32
  }
  func.func @transform_4(%arg0: i32) -> (i32, i32) {
    %c0_i32 = arith.constant 0 : i32
    %c0_i32_0 = arith.constant 0 : i32
    %c0_i32_1 = arith.constant 0 : i32
    return %c0_i32, %c0_i32_0 : i32, i32
  }
  func.func @transform_5(%arg0: i32) -> (i32, i32) {
    %c0_i32 = arith.constant 0 : i32
    %c0_i32_0 = arith.constant 0 : i32
    %c0_i32_1 = arith.constant 0 : i32
    return %c0_i32, %c0_i32_0 : i32, i32
  }
  func.func @transform_6(%arg0: i32) -> (i32, i32) {
    %c0_i32 = arith.constant 0 : i32
    %c0_i32_0 = arith.constant 0 : i32
    %c0_i32_1 = arith.constant 0 : i32
    return %c0_i32, %c0_i32_0 : i32, i32
  }
  func.func @transform_7(%arg0: i32) -> (i32, i32) {
    %c0_i32 = arith.constant 0 : i32
    %c0_i32_0 = arith.constant 0 : i32
    return %arg0, %c0_i32 : i32, i32
  }
}

</mosaic_0001>

<llo_original>
// kernel: model_forward.1
$region0: #{model_forward.1}
  #allocation0 [shape = 'u32[]', space=smem, size = 0x4, offset = 0x4, fixed_abs, tag = 'smem constant byte address 0x4 - core index']
  #allocation1 [shape = 'u32[144,128]{1,0:T(1,128)}', space=vmem, size = 0x12000, scoped, tag = 'internal scratch']
  %s0 = inlined_call_operand.vmem [shape: f32[256,32], index: 0, kind: input, shape index: {}]
  %s1 = inlined_call_operand.vmem [shape: bf16[32,400], index: 1, kind: input, shape index: {}]
  %s2 = inlined_call_operand.vmem [shape: f32[1,400], index: 2, kind: input, shape index: {}]
  %s3 = inlined_call_operand.hbm [shape: bf16[400,400], index: 3, kind: input, shape index: {}]
  %s4 = inlined_call_operand.vmem [shape: f32[1,400], index: 4, kind: input, shape index: {}]
  %s5 = inlined_call_operand.vmem [shape: bf16[400,128], index: 5, kind: input, shape index: {}]
  %s6 = inlined_call_operand.vmem [shape: f32[1,128], index: 6, kind: input, shape index: {}]
  %s7 = inlined_call_operand.vmem [shape: f32[256,128], index: 7, kind: output, shape index: {}]
  %s8 = sld [smem:[#allocation0]]
  $region65: #{model_forward.1} parent=0
    _
  %s10 = ssub.s32 1, %s8
  %s11 = scalar_select 0, %s10, %s8
  $region1: #{model_forward.1} parent=0
    #allocation2 [shape = 'u8[409600]{0}', space=vmem, size = 0x64000, scoped, tag = 'input window, operand 3, single buffered']
    #allocation3 [shape = 's32[2]{0}', space=sflag, size = 0x8, scoped, tag = 'scoped memory for model_forward.1']
    %12 = vsyncpa [#allocation3], 0
    loop: start=0, step=1, limit=4
    $region2: #{model_forward.1} parent=1 // loop_pre_header
      _
    $region3: #{model_forward.1} parent=1 // loop_header
      %s14 = sphi 0, %s18
      %p15 = scmp.ge.s32.totalorder %s14, 4
      %s24 = sphi 0, %s26
      %s27 = sphi 0, %s24
      %s28 = sphi 0, %s27
      %s44 = sphi 0, %s28
      %s48 = sphi 0, %s48
      %s50 = sphi 0, %s48
      %s51 = sphi 0, %s50
      %s65 = sphi 0, %s51
      %s69 = sphi 0, %s69
      %s71 = sphi 0, %s69
      %s72 = sphi 0, %s71
      %s86 = sphi 0, %s72
      %s90 = sphi 0, %s90
      %s92 = sphi 0, %s90
      %s93 = sphi 0, %s92
      %s107 = sphi 0, %s93
      %s111 = sphi 0, %s111
      %s113 = sphi 0, %s111
      %s114 = sphi 0, %s113
      %s128 = sphi 0, %s114
      %s132 = sphi 0, %s132
      %s134 = sphi 0, %s132
      %s135 = sphi 0, %s134
      %s149 = sphi 0, %s135
      %s153 = sphi 0, %s153
      %s155 = sphi 0, %s153
      %s156 = sphi 0, %s155
      %s170 = sphi 0, %s156
      %s176 = sphi 0, %s178
      %s179 = sphi 0, %s176
      %s180 = sphi 0, %s179
      %s196 = sphi 0, %s180
    $region4: #{model_forward.1} parent=1 // loop_header_branch
      %17 = sbr.rel (%p15) target = $region8
    $region5: #{model_forward.1} parent=1 // loop_body
      %s19 = ssub.s32 %s14, 1
      %s20 = ssub.s32 %s14, 2
      %s21 = sadd.s32 %s14, 1
      %s22 = ssub.s32 %s14, %s21
      %p23 = scmp.eq.s32.totalorder %s22, 0
      %s25 = sadd.s32 %s24, 1
      %s26 = scalar_select %p23, %s24, %s25
      %p29 = pneg %p23
      %p30 = scmp.eq.s32.totalorder %s14, 1
      %p31 = por %p29, %p30
      %p32 = scmp.ne.s32.totalorder %s24, %s27
      %p33 = scmp.eq.s32.totalorder %s14, 0
      %p34 = por %p32, %p33
      %p35 = scmp.ne.s32.totalorder %s24, %s27
      %p36 = scmp.eq.s32.totalorder %s19, 1
      %p37 = por %p35, %p36
      %p38 = scmp.ne.s32.totalorder %s27, %s28
      %p39 = scmp.eq.s32.totalorder %s19, 0
      %p40 = por %p38, %p39
      %p41 = scmp.ne.s32.totalorder %s27, %s28
      %p42 = scmp.eq.s32.totalorder %s20, 1
      %p43 = por %p41, %p42
      %p45 = scmp.ne.s32.totalorder %s28, %s44
      %p46 = scmp.eq.s32.totalorder %s20, 0
      %p47 = por %p45, %p46
      %s49 = sadd.s32 %s48, 1
      %p52 = scmp.eq.s32.totalorder %s14, 1
      %p53 = scmp.ne.s32.totalorder %s48, %s50
      %p54 = scmp.eq.s32.totalorder %s14, 0
      %p55 = por %p53, %p54
      %p56 = scmp.ne.s32.totalorder %s48, %s50
      %p57 = scmp.eq.s32.totalorder %s19, 1
      %p58 = por %p56, %p57
      %p59 = scmp.ne.s32.totalorder %s50, %s51
      %p60 = scmp.eq.s32.totalorder %s19, 0
      %p61 = por %p59, %p60
      %p62 = scmp.ne.s32.totalorder %s50, %s51
      %p63 = scmp.eq.s32.totalorder %s20, 1
      %p64 = por %p62, %p63
      %p66 = scmp.ne.s32.totalorder %s51, %s65
      %p67 = scmp.eq.s32.totalorder %s20, 0
      %p68 = por %p66, %p67
      %s70 = sadd.s32 %s69, 1
      %p73 = scmp.eq.s32.totalorder %s14, 1
      %p74 = scmp.ne.s32.totalorder %s69, %s71
      %p75 = scmp.eq.s32.totalorder %s14, 0
      %p76 = por %p74, %p75
      %p77 = scmp.ne.s32.totalorder %s69, %s71
      %p78 = scmp.eq.s32.totalorder %s19, 1
      %p79 = por %p77, %p78
      %p80 = scmp.ne.s32.totalorder %s71, %s72
      %p81 = scmp.eq.s32.totalorder %s19, 0
      %p82 = por %p80, %p81
      %p83 = scmp.ne.s32.totalorder %s71, %s72
      %p84 = scmp.eq.s32.totalorder %s20, 1
      %p85 = por %p83, %p84
      %p87 = scmp.ne.s32.totalorder %s72, %s86
      %p88 = scmp.eq.s32.totalorder %s20, 0
      %p89 = por %p87, %p88
      %s91 = sadd.s32 %s90, 1
      %p94 = scmp.eq.s32.totalorder %s14, 1
      %p95 = scmp.ne.s32.totalorder %s90, %s92
      %p96 = scmp.eq.s32.totalorder %s14, 0
      %p97 = por %p95, %p96
      %p98 = scmp.ne.s32.totalorder %s90, %s92
      %p99 = scmp.eq.s32.totalorder %s19, 1
      %p100 = por %p98, %p99
      %p101 = scmp.ne.s32.totalorder %s92, %s93
      %p102 = scmp.eq.s32.totalorder %s19, 0
      %p103 = por %p101, %p102
      %p104 = scmp.ne.s32.totalorder %s92, %s93
      %p105 = scmp.eq.s32.totalorder %s20, 1
      %p106 = por %p104, %p105
      %p108 = scmp.ne.s32.totalorder %s93, %s107
      %p109 = scmp.eq.s32.totalorder %s20, 0
      %p110 = por %p108, %p109
      %s112 = sadd.s32 %s111, 1
      %p115 = scmp.eq.s32.totalorder %s14, 1
      %p116 = scmp.ne.s32.totalorder %s111, %s113
      %p117 = scmp.eq.s32.totalorder %s14, 0
      %p118 = por %p116, %p117
      %p119 = scmp.ne.s32.totalorder %s111, %s113
      %p120 = scmp.eq.s32.totalorder %s19, 1
      %p121 = por %p119, %p120
      %p122 = scmp.ne.s32.totalorder %s113, %s114
      %p123 = scmp.eq.s32.totalorder %s19, 0
      %p124 = por %p122, %p123
      %p125 = scmp.ne.s32.totalorder %s113, %s114
      %p126 = scmp.eq.s32.totalorder %s20, 1
      %p127 = por %p125, %p126
      %p129 = scmp.ne.s32.totalorder %s114, %s128
      %p130 = scmp.eq.s32.totalorder %s20, 0
      %p131 = por %p129, %p130
      %s133 = sadd.s32 %s132, 1
      %p136 = scmp.eq.s32.totalorder %s14, 1
      %p137 = scmp.ne.s32.totalorder %s132, %s134
      %p138 = scmp.eq.s32.totalorder %s14, 0
      %p139 = por %p137, %p138
      %p140 = scmp.ne.s32.totalorder %s132, %s134
      %p141 = scmp.eq.s32.totalorder %s19, 1
      %p142 = por %p140, %p141
      %p143 = scmp.ne.s32.totalorder %s134, %s135
      %p144 = scmp.eq.s32.totalorder %s19, 0
      %p145 = por %p143, %p144
      %p146 = scmp.ne.s32.totalorder %s134, %s135
      %p147 = scmp.eq.s32.totalorder %s20, 1
      %p148 = por %p146, %p147
      %p150 = scmp.ne.s32.totalorder %s135, %s149
      %p151 = scmp.eq.s32.totalorder %s20, 0
      %p152 = por %p150, %p151
      %s154 = sadd.s32 %s153, 1
      %p157 = scmp.eq.s32.totalorder %s14, 1
      %p158 = scmp.ne.s32.totalorder %s153, %s155
      %p159 = scmp.eq.s32.totalorder %s14, 0
      %p160 = por %p158, %p159
      %p161 = scmp.ne.s32.totalorder %s153, %s155
      %p162 = scmp.eq.s32.totalorder %s19, 1
      %p163 = por %p161, %p162
      %p164 = scmp.ne.s32.totalorder %s155, %s156
      %p165 = scmp.eq.s32.totalorder %s19, 0
      %p166 = por %p164, %p165
      %p167 = scmp.ne.s32.totalorder %s155, %s156
      %p168 = scmp.eq.s32.totalorder %s20, 1
      %p169 = por %p167, %p168
      %p171 = scmp.ne.s32.totalorder %s156, %s170
      %p172 = scmp.eq.s32.totalorder %s20, 0
      %p173 = por %p171, %p172
      %s174 = ssub.s32 %s14, %s21
      %p175 = scmp.eq.s32.totalorder %s174, 0
      %s177 = sadd.s32 %s176, 1
      %s178 = scalar_select %p175, %s176, %s177
      %p181 = pneg %p175
      %p182 = scmp.eq.s32.totalorder %s14, 1
      %p183 = por %p181, %p182
      %p184 = scmp.ne.s32.totalorder %s176, %s179
      %p185 = scmp.eq.s32.totalorder %s14, 0
      %p186 = por %p184, %p185
      %p187 = scmp.ne.s32.totalorder %s176, %s179
      %p188 = scmp.eq.s32.totalorder %s19, 1
      %p189 = por %p187, %p188
      %p190 = scmp.ne.s32.totalorder %s179, %s180
      %p191 = scmp.eq.s32.totalorder %s19, 0
      %p192 = por %p190, %p191
      %p193 = scmp.ne.s32.totalorder %s179, %s180
      %p194 = scmp.eq.s32.totalorder %s20, 1
      %p195 = por %p193, %p194
      %p197 = scmp.ne.s32.totalorder %s180, %s196
      %p198 = scmp.eq.s32.totalorder %s20, 0
      %p199 = por %p197, %p198
      %p200 = scmp.le.s32.totalorder 1, %s14
      %p201 = scmp.lt.s32.totalorder %s14, 3
      %p202 = pnand %p200, %p201
      %p203 = pneg %p202
      // Predicated region
      $region9: #{model_forward.1} parent=5 // pred_check
        _
      $region10: #{model_forward.1} parent=5 // pred_check_branch
        %205 = sbr.rel (%p202) target = $region12
      $region11: #{model_forward.1} parent=5 // pred_region
        %s206 = ssub.s32 %s14, 1
        // Predicated region
        $region13: #{model_forward.1} parent=11 // pred_check
          %p207 = pneg %p61
        $region14: #{model_forward.1} parent=11 // pred_check_branch
          %209 = sbr.rel (%p207) target = $region16
        $region15: #{model_forward.1} parent=11 // pred_region
          _
        $region16: #{model_forward.1} parent=11 // pred_fallthru
          _
        // Predicated region
        $region17: #{model_forward.1} parent=11 // pred_check
          %p210 = pneg %p82
        $region18: #{model_forward.1} parent=11 // pred_check_branch
          %212 = sbr.rel (%p210) target = $region20
        $region19: #{model_forward.1} parent=11 // pred_region
          _
        $region20: #{model_forward.1} parent=11 // pred_fallthru
          _
        // Predicated region
        $region21: #{model_forward.1} parent=11 // pred_check
          %p213 = pneg %p103
        $region22: #{model_forward.1} parent=11 // pred_check_branch
          %215 = sbr.rel (%p213) target = $region24
        $region23: #{model_forward.1} parent=11 // pred_region
          %s217 = ssub.s32 12800, 12800
          %218 = vsyncadd [#allocation3], %s217
          %s219 = sshll.u32 [#allocation2], 4
          %s220 = int_to_ptr.vmem [resolvable:$true] %s219
          %225 = dma.hbm_to_vmem [thread:$0]  %s3, 12800, %s220, [#allocation3], 256, 256, 16
        $region24: #{model_forward.1} parent=11 // pred_fallthru
          _
        // Predicated region
        $region25: #{model_forward.1} parent=11 // pred_check
          %p226 = pneg %p124
        $region26: #{model_forward.1} parent=11 // pred_check_branch
          %228 = sbr.rel (%p226) target = $region28
        $region27: #{model_forward.1} parent=11 // pred_region
          _
        $region28: #{model_forward.1} parent=11 // pred_fallthru
          _
        // Predicated region
        $region29: #{model_forward.1} parent=11 // pred_check
          %p229 = pneg %p145
        $region30: #{model_forward.1} parent=11 // pred_check_branch
          %231 = sbr.rel (%p229) target = $region32
        $region31: #{model_forward.1} parent=11 // pred_region
          _
        $region32: #{model_forward.1} parent=11 // pred_fallthru
          _
        // Predicated region
        $region33: #{model_forward.1} parent=11 // pred_check
          %p232 = pneg %p166
        $region34: #{model_forward.1} parent=11 // pred_check_branch
          %234 = sbr.rel (%p232) target = $region36
        $region35: #{model_forward.1} parent=11 // pred_region
          _
        $region36: #{model_forward.1} parent=11 // pred_fallthru
          _
      $region12: #{model_forward.1} parent=5 // pred_fallthru
        _
      %p235 = scmp.lt.s32.totalorder %s14, 2
      // Predicated region
      $region37: #{model_forward.1} parent=5 // pred_check
        %p236 = pneg %p235
      $region38: #{model_forward.1} parent=5 // pred_check_branch
        %238 = sbr.rel (%p236) target = $region40
      $region39: #{model_forward.1} parent=5 // pred_region
        // Predicated region
        $region41: #{model_forward.1} parent=39 // pred_check
          %p239 = pneg %p34
        $region42: #{model_forward.1} parent=39 // pred_check_branch
          %241 = sbr.rel (%p239) target = $region44
        $region43: #{model_forward.1} parent=39 // pred_region
          %s242 = smul.u32 16, %s14
          %p243 = scmp.lt.s32.totalorder %s242, 31
          %s244 = scalar_select %p243, %s242, 31
          %s245 = smul.addr %s244, 8
          %s246 = scalar_lea.vmem %s0, %s245
          %s247 = smul.u32 16, %s14
        $region44: #{model_forward.1} parent=39 // pred_fallthru
          _
      $region40: #{model_forward.1} parent=5 // pred_fallthru
        _
      %p248 = scmp.le.s32.totalorder 1, %s14
      %p249 = scmp.lt.s32.totalorder %s14, 3
      %p250 = pnand %p248, %p249
      %p251 = pneg %p250
      // Predicated region
      $region45: #{model_forward.1} parent=5 // pred_check
        _
      $region46: #{model_forward.1} parent=5 // pred_check_branch
        %253 = sbr.rel (%p250) target = $region48
      $region47: #{model_forward.1} parent=5 // pred_region
        %s254 = ssub.s32 %s14, 1
        // Predicated region
        $region49: #{model_forward.1} parent=47 // pred_check
          %p255 = pneg %p103
        $region50: #{model_forward.1} parent=47 // pred_check_branch
          %257 = sbr.rel (%p255) target = $region52
        $region51: #{model_forward.1} parent=47 // pred_region
          %258 = dma.done [#allocation3], 12800
        $region52: #{model_forward.1} parent=47 // pred_fallthru
          _
        %s259 = smul.u32 16, %s19
        %p260 = scmp.lt.s32.totalorder %s259, 31
        %s261 = scalar_select %p260, %s259, 31
        %s262 = smul.addr %s261, 8
        %s263 = scalar_lea.vmem %s0, %s262
        %p264 = pneg %p40
        %p265 = pneg %p37
        %p266 = pneg %p61
        %p267 = pneg %p58
        %p268 = pneg %p82
        %p269 = pneg %p79
        %p270 = pneg %p103
        %p271 = pneg %p100
        %p272 = pneg %p124
        %p273 = pneg %p121
        %p274 = pneg %p145
        %p275 = pneg %p142
        %p276 = pneg %p166
        %p277 = pneg %p163
        %p278 = pneg %p192
        %p279 = pneg %p189
        %s280 = smul.u32 16, %s19
        %p281 = scmp.lt.s32.totalorder %s280, 31
        %s282 = scalar_select %p281, %s280, 31
        %s283 = smul.addr %s282, 8
        %s284 = scalar_lea.vmem %s7, %s283
        %s285 = smul.u32 16, %s19
        %p286 = scmp.lt.s32.totalorder %s285, 31
        %s287 = scalar_select %p286, %s285, 31
        %s288 = smul.addr %s287, 8
        %s289 = scalar_lea.vmem %s0, %s288
        %s290 = smul.u32 16, %s19
        %s291 = smul.u32 16, %s19
        %p292 = scmp.lt.s32.totalorder %s291, 31
        %s293 = scalar_select %p292, %s291, 31
        %s294 = smul.addr %s293, 8
        %s295 = scalar_lea.vmem %s7, %s294
        %s296 = smul.u32 16, %s19
        %v298 = vld [vmem:[%s289] sm:$0xff]
        %v299 = vld [vmem:[%s289 + $0x8] sm:$0xff]
        %v300 = vld [vmem:[%s289 + $0x10] sm:$0xff]
        %v301 = vld [vmem:[%s289 + $0x18] sm:$0xff]
        %v302 = vld [vmem:[%s289 + $0x20] sm:$0xff]
        %v303 = vld [vmem:[%s289 + $0x28] sm:$0xff]
        %v304 = vld [vmem:[%s289 + $0x30] sm:$0xff]
        %v305 = vld [vmem:[%s289 + $0x38] sm:$0xff]
        %v306 = vld [vmem:[%s289 + $0x40] sm:$0xff]
        %v307 = vld [vmem:[%s289 + $0x48] sm:$0xff]
        %v308 = vld [vmem:[%s289 + $0x50] sm:$0xff]
        %v309 = vld [vmem:[%s289 + $0x58] sm:$0xff]
        %v310 = vld [vmem:[%s289 + $0x60] sm:$0xff]
        %v311 = vld [vmem:[%s289 + $0x68] sm:$0xff]
        %v312 = vld [vmem:[%s289 + $0x70] sm:$0xff]
        %v313 = vld [vmem:[%s289 + $0x78] sm:$0xff]
        %v314 = vpack.c.bf16 %v299, %v298
        %v315 = vpack.c.bf16 %v301, %v300
        %v316 = vpack.c.bf16 %v303, %v302
        %v317 = vpack.c.bf16 %v305, %v304
        %v318 = vpack.c.bf16 %v307, %v306
        %v319 = vpack.c.bf16 %v309, %v308
        %v320 = vpack.c.bf16 %v311, %v310
        %v321 = vpack.c.bf16 %v313, %v312
        %v322 = vld [vmem:[%s1] sm:$0xff]
        %v323 = vld [vmem:[%s1 + $0x8] sm:$0xff]
        %v324 = vld [vmem:[%s1 + $0x10] sm:$0xff]
        %v325 = vld [vmem:[%s1 + $0x18] sm:$0xff]
        %v326 = vld [vmem:[%s1 + $0x20] sm:$0xff]
        %v327 = vld [vmem:[%s1 + $0x28] sm:$0xff]
        %v328 = vld [vmem:[%s1 + $0x30] sm:$0xff]
        %v329 = vld [vmem:[%s1 + $0x38] sm:$0xff]
        %v330 = vld [vmem:[%s2] sm:$0xf]
        %v332 = vlaneseq
        %v333 = vshrl.u32 %v332, 7
        %v334 = vsub.s32 0, %v333
        %v335 = vrot.slane %v330, %v334
        %v336 = vlaneseq
        %v337 = vshrl.u32 %v336, 7
        %v338 = vsub.s32 1, %v337
        %v339 = vrot.slane %v330, %v338
        %v340 = vlaneseq
        %v341 = vshrl.u32 %v340, 7
        %v342 = vsub.s32 2, %v341
        %v343 = vrot.slane %v330, %v342
        %v344 = vlaneseq
        %v345 = vshrl.u32 %v344, 7
        %v346 = vsub.s32 3, %v345
        %v347 = vrot.slane %v330, %v346
        %v360 = vunpack.c.l.b16 %v322
        %v361 = vunpack.c.h.b16 %v322
        %v362 = vunpack.c.l.b16 %v323
        %v363 = vunpack.c.h.b16 %v323
        %v364 = vunpack.c.l.b16 %v324
        %v365 = vunpack.c.h.b16 %v324
        %v366 = vunpack.c.l.b16 %v325
        %v367 = vunpack.c.h.b16 %v325
        %v368 = vunpack.c.l.b16 %v326
        %v369 = vunpack.c.h.b16 %v326
        %v370 = vunpack.c.l.b16 %v327
        %v371 = vunpack.c.h.b16 %v327
        %v372 = vunpack.c.l.b16 %v328
        %v373 = vunpack.c.h.b16 %v328
        %v374 = vunpack.c.l.b16 %v329
        %v375 = vunpack.c.h.b16 %v329
        %v376 = vpack.c.b16 %v364, %v360
        %v377 = vpack.c.b16 %v365, %v361
        %v378 = vpack.c.b16 %v366, %v362
        %v379 = vpack.c.b16 %v367, %v363
        %v380 = vpack.c.b16 %v372, %v368
        %v381 = vpack.c.b16 %v373, %v369
        %v382 = vpack.c.b16 %v374, %v370
        %v383 = vpack.c.b16 %v375, %v371
        %vm392 = vcmask 261120
        %v394 = vsel %vm392, %v314, 0
        %v397 = vsel %vm392, %v315, 0
        %v400 = vsel %vm392, %v316, 0
        %v403 = vsel %vm392, %v317, 0
        %v406 = vsel %vm392, %v318, 0
        %v409 = vsel %vm392, %v319, 0
        %v412 = vsel %vm392, %v320, 0
        %v415 = vsel %vm392, %v321, 0
        %417 = vmatprep.subr.bf16.mxu0 0
        %418 = vmatpush1.bf16.msra.mxu0 0
        %419 = vmatprep.subr.bf16.mxu0 0
        %420 = vmatpush1.bf16.msra.mxu0 0
        %421 = vmatprep.subr.bf16.mxu0 0
        %422 = vmatpush1.bf16.msra.mxu0 0
        %423 = vmatprep.subr.bf16.mxu0 0
        %424 = vmatpush1.bf16.msra.mxu0 0
        %425 = vmatprep.subr.bf16.mxu0 0
        %426 = vmatpush1.bf16.msra.mxu0 0
        %427 = vmatprep.subr.bf16.mxu0 0
        %428 = vmatpush1.bf16.msra.mxu0 0
        %429 = vmatprep.subr.bf16.mxu0 %v381
        %430 = vmatpush1.bf16.msra.mxu0 %v380
        %431 = vmatprep.subr.bf16.mxu0 %v377
        %432 = vmatpush1.bf16.msra.mxu0 %v376
        %433 = vmatprep.subr.bf16.mxu0 0
        %434 = vmatpush2.bf16.msra.mxu0 0
        %435 = vmatprep.subr.bf16.mxu0 0
        %436 = vmatpush2.bf16.msra.mxu0 0
        %437 = vmatprep.subr.bf16.mxu0 0
        %438 = vmatpush2.bf16.msra.mxu0 0
        %439 = vmatprep.subr.bf16.mxu0 0
        %440 = vmatpush2.bf16.msra.mxu0 0
        %441 = vmatprep.subr.bf16.mxu0 0
        %442 = vmatpush2.bf16.msra.mxu0 0
        %443 = vmatprep.subr.bf16.mxu0 0
        %444 = vmatpush2.bf16.msra.mxu0 0
        %445 = vmatprep.subr.bf16.mxu0 0
        %446 = vmatpush2.bf16.msra.mxu0 0
        %447 = vmatprep.subr.bf16.mxu0 0
        %448 = vmatpush2.bf16.msra.mxu0 0
        %449 = vmatprep.mubr.bf16.mxu0 0
        %450 = vmatmul.mubr.bf16.gmra.mxu0 %v394
        %v451 = vpop.f32.mrf.mxu0
        %v452 = vadd.f32 %v335, %v451
        %v453 = vpop.f32.mrf.mxu0
        %v454 = vadd.f32 %v339, %v453
        %v455 = vpop.f32.mrf.mxu0
        %v456 = vadd.f32 %v335, %v455
        %v457 = vpop.f32.mrf.mxu0
        %v458 = vadd.f32 %v339, %v457
        %459 = vmatprep.mubr.bf16.mxu0 0
        %460 = vmatmul.mubr.bf16.gmra.mxu0 %v397
        %v461 = vpop.f32.mrf.mxu0
        %v462 = vadd.f32 %v335, %v461
        %v463 = vpop.f32.mrf.mxu0
        %v464 = vadd.f32 %v339, %v463
        %v465 = vpop.f32.mrf.mxu0
        %v466 = vadd.f32 %v335, %v465
        %v467 = vpop.f32.mrf.mxu0
        %v468 = vadd.f32 %v339, %v467
        %469 = vmatprep.mubr.bf16.mxu0 0
        %470 = vmatmul.mubr.bf16.gmra.mxu0 %v400
        %v471 = vpop.f32.mrf.mxu0
        %v472 = vadd.f32 %v335, %v471
        %v473 = vpop.f32.mrf.mxu0
        %v474 = vadd.f32 %v339, %v473
        %v475 = vpop.f32.mrf.mxu0
        %v476 = vadd.f32 %v335, %v475
        %v477 = vpop.f32.mrf.mxu0
        %v478 = vadd.f32 %v339, %v477
        %479 = vmatprep.mubr.bf16.mxu0 0
        %480 = vmatmul.mubr.bf16.gmra.mxu0 %v403
        %v481 = vpop.f32.mrf.mxu0
        %v482 = vadd.f32 %v335, %v481
        %v483 = vpop.f32.mrf.mxu0
        %v484 = vadd.f32 %v339, %v483
        %v485 = vpop.f32.mrf.mxu0
        %v486 = vadd.f32 %v335, %v485
        %v487 = vpop.f32.mrf.mxu0
        %v488 = vadd.f32 %v339, %v487
        %489 = vmatprep.mubr.bf16.mxu0 0
        %490 = vmatmul.mubr.bf16.gmra.mxu0 %v406
        %v491 = vpop.f32.mrf.mxu0
        %v492 = vadd.f32 %v335, %v491
        %v493 = vpop.f32.mrf.mxu0
        %v494 = vadd.f32 %v339, %v493
        %v495 = vpop.f32.mrf.mxu0
        %v496 = vadd.f32 %v335, %v495
        %v497 = vpop.f32.mrf.mxu0
        %v498 = vadd.f32 %v339, %v497
        %499 = vmatprep.mubr.bf16.mxu0 0
        %500 = vmatmul.mubr.bf16.gmra.mxu0 %v409
        %v501 = vpop.f32.mrf.mxu0
        %v502 = vadd.f32 %v335, %v501
        %v503 = vpop.f32.mrf.mxu0
        %v504 = vadd.f32 %v339, %v503
        %v505 = vpop.f32.mrf.mxu0
        %v506 = vadd.f32 %v335, %v505
        %v507 = vpop.f32.mrf.mxu0
        %v508 = vadd.f32 %v339, %v507
        %509 = vmatprep.mubr.bf16.mxu0 0
        %510 = vmatmul.mubr.bf16.gmra.mxu0 %v412
        %v511 = vpop.f32.mrf.mxu0
        %v512 = vadd.f32 %v335, %v511
        %v513 = vpop.f32.mrf.mxu0
        %v514 = vadd.f32 %v339, %v513
        %v515 = vpop.f32.mrf.mxu0
        %v516 = vadd.f32 %v335, %v515
        %v517 = vpop.f32.mrf.mxu0
        %v518 = vadd.f32 %v339, %v517
        %519 = vmatprep.mubr.bf16.mxu0 0
        %520 = vmatmul.mubr.bf16.gmra.mxu0 %v415
        %v521 = vpop.f32.mrf.mxu0
        %v522 = vadd.f32 %v335, %v521
        %v523 = vpop.f32.mrf.mxu0
        %v524 = vadd.f32 %v339, %v523
        %v525 = vpop.f32.mrf.mxu0
        %v526 = vadd.f32 %v335, %v525
        %v527 = vpop.f32.mrf.mxu0
        %v528 = vadd.f32 %v339, %v527
        %529 = vdwg.mxu0
        %530 = vmatprep.subr.bf16.mxu0 0
        %531 = vmatpush1.bf16.msra.mxu0 0
        %532 = vmatprep.subr.bf16.mxu0 0
        %533 = vmatpush1.bf16.msra.mxu0 0
        %534 = vmatprep.subr.bf16.mxu0 0
        %535 = vmatpush1.bf16.msra.mxu0 0
        %536 = vmatprep.subr.bf16.mxu0 0
        %537 = vmatpush1.bf16.msra.mxu0 0
        %538 = vmatprep.subr.bf16.mxu0 0
        %539 = vmatpush1.bf16.msra.mxu0 0
        %540 = vmatprep.subr.bf16.mxu0 0
        %541 = vmatpush1.bf16.msra.mxu0 0
        %542 = vmatprep.subr.bf16.mxu0 %v383
        %543 = vmatpush1.bf16.msra.mxu0 %v382
        %544 = vmatprep.subr.bf16.mxu0 %v379
        %545 = vmatpush1.bf16.msra.mxu0 %v378
        %546 = vmatprep.subr.bf16.mxu0 0
        %547 = vmatpush2.bf16.msra.mxu0 0
        %548 = vmatprep.subr.bf16.mxu0 0
        %549 = vmatpush2.bf16.msra.mxu0 0
        %550 = vmatprep.subr.bf16.mxu0 0
        %551 = vmatpush2.bf16.msra.mxu0 0
        %552 = vmatprep.subr.bf16.mxu0 0
        %553 = vmatpush2.bf16.msra.mxu0 0
        %554 = vmatprep.subr.bf16.mxu0 0
        %555 = vmatpush2.bf16.msra.mxu0 0
        %556 = vmatprep.subr.bf16.mxu0 0
        %557 = vmatpush2.bf16.msra.mxu0 0
        %558 = vmatprep.subr.bf16.mxu0 0
        %559 = vmatpush2.bf16.msra.mxu0 0
        %560 = vmatprep.subr.bf16.mxu0 0
        %561 = vmatpush2.bf16.msra.mxu0 0
        %562 = vmatprep.mubr.bf16.mxu0 0
        %563 = vmatmul.mubr.bf16.gmra.mxu0 %v394
        %v564 = vpop.f32.mrf.mxu0
        %v565 = vadd.f32 %v343, %v564
        %v566 = vpop.f32.mrf.mxu0
        %v567 = vadd.f32 %v347, %v566
        %v568 = vpop.f32.mrf.mxu0
        %v569 = vadd.f32 %v343, %v568
        %v570 = vpop.f32.mrf.mxu0
        %v571 = vadd.f32 %v347, %v570
        %572 = vmatprep.mubr.bf16.mxu0 0
        %573 = vmatmul.mubr.bf16.gmra.mxu0 %v397
        %v574 = vpop.f32.mrf.mxu0
        %v575 = vadd.f32 %v343, %v574
        %v576 = vpop.f32.mrf.mxu0
        %v577 = vadd.f32 %v347, %v576
        %v578 = vpop.f32.mrf.mxu0
        %v579 = vadd.f32 %v343, %v578
        %v580 = vpop.f32.mrf.mxu0
        %v581 = vadd.f32 %v347, %v580
        %582 = vmatprep.mubr.bf16.mxu0 0
        %583 = vmatmul.mubr.bf16.gmra.mxu0 %v400
        %v584 = vpop.f32.mrf.mxu0
        %v585 = vadd.f32 %v343, %v584
        %v586 = vpop.f32.mrf.mxu0
        %v587 = vadd.f32 %v347, %v586
        %v588 = vpop.f32.mrf.mxu0
        %v589 = vadd.f32 %v343, %v588
        %v590 = vpop.f32.mrf.mxu0
        %v591 = vadd.f32 %v347, %v590
        %592 = vmatprep.mubr.bf16.mxu0 0
        %593 = vmatmul.mubr.bf16.gmra.mxu0 %v403
        %v594 = vpop.f32.mrf.mxu0
        %v595 = vadd.f32 %v343, %v594
        %v596 = vpop.f32.mrf.mxu0
        %v597 = vadd.f32 %v347, %v596
        %v598 = vpop.f32.mrf.mxu0
        %v599 = vadd.f32 %v343, %v598
        %v600 = vpop.f32.mrf.mxu0
        %v601 = vadd.f32 %v347, %v600
        %602 = vmatprep.mubr.bf16.mxu0 0
        %603 = vmatmul.mubr.bf16.gmra.mxu0 %v406
        %v604 = vpop.f32.mrf.mxu0
        %v605 = vadd.f32 %v343, %v604
        %v606 = vpop.f32.mrf.mxu0
        %v607 = vadd.f32 %v347, %v606
        %v608 = vpop.f32.mrf.mxu0
        %v609 = vadd.f32 %v343, %v608
        %v610 = vpop.f32.mrf.mxu0
        %v611 = vadd.f32 %v347, %v610
        %612 = vmatprep.mubr.bf16.mxu0 0
        %613 = vmatmul.mubr.bf16.gmra.mxu0 %v409
        %v614 = vpop.f32.mrf.mxu0
        %v615 = vadd.f32 %v343, %v614
        %v616 = vpop.f32.mrf.mxu0
        %v617 = vadd.f32 %v347, %v616
        %v618 = vpop.f32.mrf.mxu0
        %v619 = vadd.f32 %v343, %v618
        %v620 = vpop.f32.mrf.mxu0
        %v621 = vadd.f32 %v347, %v620
        %622 = vmatprep.mubr.bf16.mxu0 0
        %623 = vmatmul.mubr.bf16.gmra.mxu0 %v412
        %v624 = vpop.f32.mrf.mxu0
        %v625 = vadd.f32 %v343, %v624
        %v626 = vpop.f32.mrf.mxu0
        %v627 = vadd.f32 %v347, %v626
        %v628 = vpop.f32.mrf.mxu0
        %v629 = vadd.f32 %v343, %v628
        %v630 = vpop.f32.mrf.mxu0
        %v631 = vadd.f32 %v347, %v630
        %632 = vmatprep.mubr.bf16.mxu0 0
        %633 = vmatmul.mubr.bf16.gmra.mxu0 %v415
        %v634 = vpop.f32.mrf.mxu0
        %v635 = vadd.f32 %v343, %v634
        %v636 = vpop.f32.mrf.mxu0
        %v637 = vadd.f32 %v347, %v636
        %v638 = vpop.f32.mrf.mxu0
        %v639 = vadd.f32 %v343, %v638
        %v640 = vpop.f32.mrf.mxu0
        %v641 = vadd.f32 %v347, %v640
        %642 = vdwg.mxu0
        %v643 = vmax.f32 %v452, 0.0
        %v644 = vmax.f32 %v454, 0.0
        %v645 = vmax.f32 %v565, 0.0
        %v646 = vmax.f32 %v567, 0.0
        %v647 = vmax.f32 %v456, 0.0
        %v648 = vmax.f32 %v458, 0.0
        %v649 = vmax.f32 %v569, 0.0
        %v650 = vmax.f32 %v571, 0.0
        %v651 = vmax.f32 %v462, 0.0
        %v652 = vmax.f32 %v464, 0.0
        %v653 = vmax.f32 %v575, 0.0
        %v654 = vmax.f32 %v577, 0.0
        %v655 = vmax.f32 %v466, 0.0
        %v656 = vmax.f32 %v468, 0.0
        %v657 = vmax.f32 %v579, 0.0
        %v658 = vmax.f32 %v581, 0.0
        %v659 = vmax.f32 %v472, 0.0
        %v660 = vmax.f32 %v474, 0.0
        %v661 = vmax.f32 %v585, 0.0
        %v662 = vmax.f32 %v587, 0.0
        %v663 = vmax.f32 %v476, 0.0
        %v664 = vmax.f32 %v478, 0.0
        %v665 = vmax.f32 %v589, 0.0
        %v666 = vmax.f32 %v591, 0.0
        %v667 = vmax.f32 %v482, 0.0
        %v668 = vmax.f32 %v484, 0.0
        %v669 = vmax.f32 %v595, 0.0
        %v670 = vmax.f32 %v597, 0.0
        %v671 = vmax.f32 %v486, 0.0
        %v672 = vmax.f32 %v488, 0.0
        %v673 = vmax.f32 %v599, 0.0
        %v674 = vmax.f32 %v601, 0.0
        %v675 = vmax.f32 %v492, 0.0
        %v676 = vmax.f32 %v494, 0.0
        %v677 = vmax.f32 %v605, 0.0
        %v678 = vmax.f32 %v607, 0.0
        %v679 = vmax.f32 %v496, 0.0
        %v680 = vmax.f32 %v498, 0.0
        %v681 = vmax.f32 %v609, 0.0
        %v682 = vmax.f32 %v611, 0.0
        %v683 = vmax.f32 %v502, 0.0
        %v684 = vmax.f32 %v504, 0.0
        %v685 = vmax.f32 %v615, 0.0
        %v686 = vmax.f32 %v617, 0.0
        %v687 = vmax.f32 %v506, 0.0
        %v688 = vmax.f32 %v508, 0.0
        %v689 = vmax.f32 %v619, 0.0
        %v690 = vmax.f32 %v621, 0.0
        %v691 = vmax.f32 %v512, 0.0
        %v692 = vmax.f32 %v514, 0.0
        %v693 = vmax.f32 %v625, 0.0
        %v694 = vmax.f32 %v627, 0.0
        %v695 = vmax.f32 %v516, 0.0
        %v696 = vmax.f32 %v518, 0.0
        %v697 = vmax.f32 %v629, 0.0
        %v698 = vmax.f32 %v631, 0.0
        %v699 = vmax.f32 %v522, 0.0
        %v700 = vmax.f32 %v524, 0.0
        %v701 = vmax.f32 %v635, 0.0
        %v702 = vmax.f32 %v637, 0.0
        %v703 = vmax.f32 %v526, 0.0
        %v704 = vmax.f32 %v528, 0.0
        %v705 = vmax.f32 %v639, 0.0
        %v706 = vmax.f32 %v641, 0.0
        %v707 = vpack.c.bf16 %v647, %v643
        %v708 = vpack.c.bf16 %v648, %v644
        %v709 = vpack.c.bf16 %v649, %v645
        %v710 = vpack.c.bf16 %v650, %v646
        %v711 = vpack.c.bf16 %v655, %v651
        %v712 = vpack.c.bf16 %v656, %v652
        %v713 = vpack.c.bf16 %v657, %v653
        %v714 = vpack.c.bf16 %v658, %v654
        %v715 = vpack.c.bf16 %v663, %v659
        %v716 = vpack.c.bf16 %v664, %v660
        %v717 = vpack.c.bf16 %v665, %v661
        %v718 = vpack.c.bf16 %v666, %v662
        %v719 = vpack.c.bf16 %v671, %v667
        %v720 = vpack.c.bf16 %v672, %v668
        %v721 = vpack.c.bf16 %v673, %v669
        %v722 = vpack.c.bf16 %v674, %v670
        %v723 = vpack.c.bf16 %v679, %v675
        %v724 = vpack.c.bf16 %v680, %v676
        %v725 = vpack.c.bf16 %v681, %v677
        %v726 = vpack.c.bf16 %v682, %v678
        %v727 = vpack.c.bf16 %v687, %v683
        %v728 = vpack.c.bf16 %v688, %v684
        %v729 = vpack.c.bf16 %v689, %v685
        %v730 = vpack.c.bf16 %v690, %v686
        %v731 = vpack.c.bf16 %v695, %v691
        %v732 = vpack.c.bf16 %v696, %v692
        %v733 = vpack.c.bf16 %v697, %v693
        %v734 = vpack.c.bf16 %v698, %v694
        %v735 = vpack.c.bf16 %v703, %v699
        %v736 = vpack.c.bf16 %v704, %v700
        %v737 = vpack.c.bf16 %v705, %v701
        %v738 = vpack.c.bf16 %v706, %v702
        %v739 = vld [vmem:[#allocation2] sm:$0xff]
        %v740 = vld [vmem:[#allocation2 + $0x8] sm:$0xff]
        %v741 = vld [vmem:[#allocation2 + $0x10] sm:$0xff]
        %v742 = vld [vmem:[#allocation2 + $0x18] sm:$0xff]
        %v743 = vld [vmem:[#allocation2 + $0x20] sm:$0xff]
        %v744 = vld [vmem:[#allocation2 + $0x28] sm:$0xff]
        %v745 = vld [vmem:[#allocation2 + $0x30] sm:$0xff]
        %v746 = vld [vmem:[#allocation2 + $0x38] sm:$0xff]
        %v747 = vld [vmem:[#allocation2 + $0x40] sm:$0xff]
        %v748 = vld [vmem:[#allocation2 + $0x48] sm:$0xff]
        %v749 = vld [vmem:[#allocation2 + $0x50] sm:$0xff]
        %v750 = vld [vmem:[#allocation2 + $0x58] sm:$0xff]
        %v751 = vld [vmem:[#allocation2 + $0x60] sm:$0xff]
        %v752 = vld [vmem:[#allocation2 + $0x68] sm:$0xff]
        %v753 = vld [vmem:[#allocation2 + $0x70] sm:$0xff]
        %v754 = vld [vmem:[#allocation2 + $0x78] sm:$0xff]
        %v755 = vld [vmem:[#allocation2 + $0x80] sm:$0xff]
        %v756 = vld [vmem:[#allocation2 + $0x88] sm:$0xff]
        %v757 = vld [vmem:[#allocation2 + $0x90] sm:$0xff]
        %v758 = vld [vmem:[#allocation2 + $0x98] sm:$0xff]
        %v759 = vld [vmem:[#allocation2 + $0xa0] sm:$0xff]
        %v760 = vld [vmem:[#allocation2 + $0xa8] sm:$0xff]
        %v761 = vld [vmem:[#allocation2 + $0xb0] sm:$0xff]
        %v762 = vld [vmem:[#allocation2 + $0xb8] sm:$0xff]
        %v763 = vld [vmem:[#allocation2 + $0xc0] sm:$0xff]
        %v764 = vld [vmem:[#allocation2 + $0xc8] sm:$0xff]
        %v765 = vld [vmem:[#allocation2 + $0xd0] sm:$0xff]
        %v766 = vld [vmem:[#allocation2 + $0xd8] sm:$0xff]
        %v767 = vld [vmem:[#allocation2 + $0xe0] sm:$0xff]
        %v768 = vld [vmem:[#allocation2 + $0xe8] sm:$0xff]
        %v769 = vld [vmem:[#allocation2 + $0xf0] sm:$0xff]
        %v770 = vld [vmem:[#allocation2 + $0xf8] sm:$0xff]
        %v771 = vld [vmem:[#allocation2 + $0x100] sm:$0xff]
        %v772 = vld [vmem:[#allocation2 + $0x108] sm:$0xff]
        %v773 = vld [vmem:[#allocation2 + $0x110] sm:$0xff]
        %v774 = vld [vmem:[#allocation2 + $0x118] sm:$0xff]
        %v775 = vld [vmem:[#allocation2 + $0x120] sm:$0xff]
        %v776 = vld [vmem:[#allocation2 + $0x128] sm:$0xff]
        %v777 = vld [vmem:[#allocation2 + $0x130] sm:$0xff]
        %v778 = vld [vmem:[#allocation2 + $0x138] sm:$0xff]
        %v779 = vld [vmem:[#allocation2 + $0x140] sm:$0xff]
        %v780 = vld [vmem:[#allocation2 + $0x148] sm:$0xff]
        %v781 = vld [vmem:[#allocation2 + $0x150] sm:$0xff]
        %v782 = vld [vmem:[#allocation2 + $0x158] sm:$0xff]
        %v783 = vld [vmem:[#allocation2 + $0x160] sm:$0xff]
        %v784 = vld [vmem:[#allocation2 + $0x168] sm:$0xff]
        %v785 = vld [vmem:[#allocation2 + $0x170] sm:$0xff]
        %v786 = vld [vmem:[#allocation2 + $0x178] sm:$0xff]
        %v787 = vld [vmem:[#allocation2 + $0x180] sm:$0xff]
        %v788 = vld [vmem:[#allocation2 + $0x188] sm:$0xff]
        %v789 = vld [vmem:[#allocation2 + $0x190] sm:$0xff]
        %v790 = vld [vmem:[#allocation2 + $0x198] sm:$0xff]
        %v791 = vld [vmem:[#allocation2 + $0x1a0] sm:$0xff]
        %v792 = vld [vmem:[#allocation2 + $0x1a8] sm:$0xff]
        %v793 = vld [vmem:[#allocation2 + $0x1b0] sm:$0xff]
        %v794 = vld [vmem:[#allocation2 + $0x1b8] sm:$0xff]
        %v795 = vld [vmem:[#allocation2 + $0x1c0] sm:$0xff]
        %v796 = vld [vmem:[#allocation2 + $0x1c8] sm:$0xff]
        %v797 = vld [vmem:[#allocation2 + $0x1d0] sm:$0xff]
        %v798 = vld [vmem:[#allocation2 + $0x1d8] sm:$0xff]
        %v799 = vld [vmem:[#allocation2 + $0x1e0] sm:$0xff]
        %v800 = vld [vmem:[#allocation2 + $0x1e8] sm:$0xff]
        %v801 = vld [vmem:[#allocation2 + $0x1f0] sm:$0xff]
        %v802 = vld [vmem:[#allocation2 + $0x1f8] sm:$0xff]
        %v803 = vld [vmem:[#allocation2 + $0x200] sm:$0xff]
        %v804 = vld [vmem:[#allocation2 + $0x208] sm:$0xff]
        %v805 = vld [vmem:[#allocation2 + $0x210] sm:$0xff]
        %v806 = vld [vmem:[#allocation2 + $0x218] sm:$0xff]
        %v807 = vld [vmem:[#allocation2 + $0x220] sm:$0xff]
        %v808 = vld [vmem:[#allocation2 + $0x228] sm:$0xff]
        %v809 = vld [vmem:[#allocation2 + $0x230] sm:$0xff]
        %v810 = vld [vmem:[#allocation2 + $0x238] sm:$0xff]
        %v811 = vld [vmem:[#allocation2 + $0x240] sm:$0xff]
        %v812 = vld [vmem:[#allocation2 + $0x248] sm:$0xff]
        %v813 = vld [vmem:[#allocation2 + $0x250] sm:$0xff]
        %v814 = vld [vmem:[#allocation2 + $0x258] sm:$0xff]
        %v815 = vld [vmem:[#allocation2 + $0x260] sm:$0xff]
        %v816 = vld [vmem:[#allocation2 + $0x268] sm:$0xff]
        %v817 = vld [vmem:[#allocation2 + $0x270] sm:$0xff]
        %v818 = vld [vmem:[#allocation2 + $0x278] sm:$0xff]
        %v819 = vld [vmem:[#allocation2 + $0x280] sm:$0xff]
        %v820 = vld [vmem:[#allocation2 + $0x288] sm:$0xff]
        %v821 = vld [vmem:[#allocation2 + $0x290] sm:$0xff]
        %v822 = vld [vmem:[#allocation2 + $0x298] sm:$0xff]
        %v823 = vld [vmem:[#allocation2 + $0x2a0] sm:$0xff]
        %v824 = vld [vmem:[#allocation2 + $0x2a8] sm:$0xff]
        %v825 = vld [vmem:[#allocation2 + $0x2b0] sm:$0xff]
        %v826 = vld [vmem:[#allocation2 + $0x2b8] sm:$0xff]
        %v827 = vld [vmem:[#allocation2 + $0x2c0] sm:$0xff]
        %v828 = vld [vmem:[#allocation2 + $0x2c8] sm:$0xff]
        %v829 = vld [vmem:[#allocation2 + $0x2d0] sm:$0xff]
        %v830 = vld [vmem:[#allocation2 + $0x2d8] sm:$0xff]
        %v831 = vld [vmem:[#allocation2 + $0x2e0] sm:$0xff]
        %v832 = vld [vmem:[#allocation2 + $0x2e8] sm:$0xff]
        %v833 = vld [vmem:[#allocation2 + $0x2f0] sm:$0xff]
        %v834 = vld [vmem:[#allocation2 + $0x2f8] sm:$0xff]
        %v835 = vld [vmem:[#allocation2 + $0x300] sm:$0xff]
        %v836 = vld [vmem:[#allocation2 + $0x308] sm:$0xff]
        %v837 = vld [vmem:[#allocation2 + $0x310] sm:$0xff]
        %v838 = vld [vmem:[#allocation2 + $0x318] sm:$0xff]
        %v839 = vld [vmem:[%s4] sm:$0xf]
        %v841 = vlaneseq
        %v842 = vshrl.u32 %v841, 7
        %v843 = vsub.s32 0, %v842
        %v844 = vrot.slane %v839, %v843
        %v845 = vlaneseq
        %v846 = vshrl.u32 %v845, 7
        %v847 = vsub.s32 1, %v846
        %v848 = vrot.slane %v839, %v847
        %v849 = vlaneseq
        %v850 = vshrl.u32 %v849, 7
        %v851 = vsub.s32 2, %v850
        %v852 = vrot.slane %v839, %v851
        %v853 = vlaneseq
        %v854 = vshrl.u32 %v853, 7
        %v855 = vsub.s32 3, %v854
        %v856 = vrot.slane %v839, %v855
        %v961 = vunpack.c.l.b16 %v739
        %v962 = vunpack.c.h.b16 %v739
        %v963 = vunpack.c.l.b16 %v740
        %v964 = vunpack.c.h.b16 %v740
        %v965 = vunpack.c.l.b16 %v741
        %v966 = vunpack.c.h.b16 %v741
        %v967 = vunpack.c.l.b16 %v742
        %v968 = vunpack.c.h.b16 %v742
        %v969 = vunpack.c.l.b16 %v743
        %v970 = vunpack.c.h.b16 %v743
        %v971 = vunpack.c.l.b16 %v744
        %v972 = vunpack.c.h.b16 %v744
        %v973 = vunpack.c.l.b16 %v745
        %v974 = vunpack.c.h.b16 %v745
        %v975 = vunpack.c.l.b16 %v746
        %v976 = vunpack.c.h.b16 %v746
        %v977 = vunpack.c.l.b16 %v747
        %v978 = vunpack.c.h.b16 %v747
        %v979 = vunpack.c.l.b16 %v748
        %v980 = vunpack.c.h.b16 %v748
        %v981 = vunpack.c.l.b16 %v749
        %v982 = vunpack.c.h.b16 %v749
        %v983 = vunpack.c.l.b16 %v750
        %v984 = vunpack.c.h.b16 %v750
        %v985 = vunpack.c.l.b16 %v751
        %v986 = vunpack.c.h.b16 %v751
        %v987 = vunpack.c.l.b16 %v752
        %v988 = vunpack.c.h.b16 %v752
        %v989 = vunpack.c.l.b16 %v753
        %v990 = vunpack.c.h.b16 %v753
        %v991 = vunpack.c.l.b16 %v754
        %v992 = vunpack.c.h.b16 %v754
        %v993 = vunpack.c.l.b16 %v755
        %v994 = vunpack.c.h.b16 %v755
        %v995 = vunpack.c.l.b16 %v756
        %v996 = vunpack.c.h.b16 %v756
        %v997 = vunpack.c.l.b16 %v757
        %v998 = vunpack.c.h.b16 %v757
        %v999 = vunpack.c.l.b16 %v758
        %v1000 = vunpack.c.h.b16 %v758
        %v1001 = vunpack.c.l.b16 %v759
        %v1002 = vunpack.c.h.b16 %v759
        %v1003 = vunpack.c.l.b16 %v760
        %v1004 = vunpack.c.h.b16 %v760
        %v1005 = vunpack.c.l.b16 %v761
        %v1006 = vunpack.c.h.b16 %v761
        %v1007 = vunpack.c.l.b16 %v762
        %v1008 = vunpack.c.h.b16 %v762
        %v1009 = vunpack.c.l.b16 %v763
        %v1010 = vunpack.c.h.b16 %v763
        %v1011 = vunpack.c.l.b16 %v764
        %v1012 = vunpack.c.h.b16 %v764
        %v1013 = vunpack.c.l.b16 %v765
        %v1014 = vunpack.c.h.b16 %v765
        %v1015 = vunpack.c.l.b16 %v766
        %v1016 = vunpack.c.h.b16 %v766
        %v1017 = vunpack.c.l.b16 %v767
        %v1018 = vunpack.c.h.b16 %v767
        %v1019 = vunpack.c.l.b16 %v768
        %v1020 = vunpack.c.h.b16 %v768
        %v1021 = vunpack.c.l.b16 %v769
        %v1022 = vunpack.c.h.b16 %v769
        %v1023 = vunpack.c.l.b16 %v770
        %v1024 = vunpack.c.h.b16 %v770
        %v1025 = vunpack.c.l.b16 %v771
        %v1026 = vunpack.c.h.b16 %v771
        %v1027 = vunpack.c.l.b16 %v772
        %v1028 = vunpack.c.h.b16 %v772
        %v1029 = vunpack.c.l.b16 %v773
        %v1030 = vunpack.c.h.b16 %v773
        %v1031 = vunpack.c.l.b16 %v774
        %v1032 = vunpack.c.h.b16 %v774
        %v1033 = vunpack.c.l.b16 %v775
        %v1034 = vunpack.c.h.b16 %v775
        %v1035 = vunpack.c.l.b16 %v776
        %v1036 = vunpack.c.h.b16 %v776
        %v1037 = vunpack.c.l.b16 %v777
        %v1038 = vunpack.c.h.b16 %v777
        %v1039 = vunpack.c.l.b16 %v778
        %v1040 = vunpack.c.h.b16 %v778
        %v1041 = vunpack.c.l.b16 %v779
        %v1042 = vunpack.c.h.b16 %v779
        %v1043 = vunpack.c.l.b16 %v780
        %v1044 = vunpack.c.h.b16 %v780
        %v1045 = vunpack.c.l.b16 %v781
        %v1046 = vunpack.c.h.b16 %v781
        %v1047 = vunpack.c.l.b16 %v782
        %v1048 = vunpack.c.h.b16 %v782
        %v1049 = vunpack.c.l.b16 %v783
        %v1050 = vunpack.c.h.b16 %v783
        %v1051 = vunpack.c.l.b16 %v784
        %v1052 = vunpack.c.h.b16 %v784
        %v1053 = vunpack.c.l.b16 %v785
        %v1054 = vunpack.c.h.b16 %v785
        %v1055 = vunpack.c.l.b16 %v786
        %v1056 = vunpack.c.h.b16 %v786
        %v1057 = vunpack.c.l.b16 %v787
        %v1058 = vunpack.c.h.b16 %v787
        %v1059 = vunpack.c.l.b16 %v788
        %v1060 = vunpack.c.h.b16 %v788
        %v1061 = vunpack.c.l.b16 %v789
        %v1062 = vunpack.c.h.b16 %v789
        %v1063 = vunpack.c.l.b16 %v790
        %v1064 = vunpack.c.h.b16 %v790
        %v1065 = vunpack.c.l.b16 %v791
        %v1066 = vunpack.c.h.b16 %v791
        %v1067 = vunpack.c.l.b16 %v792
        %v1068 = vunpack.c.h.b16 %v792
        %v1069 = vunpack.c.l.b16 %v793
        %v1070 = vunpack.c.h.b16 %v793
        %v1071 = vunpack.c.l.b16 %v794
        %v1072 = vunpack.c.h.b16 %v794
        %v1073 = vunpack.c.l.b16 %v795
        %v1074 = vunpack.c.h.b16 %v795
        %v1075 = vunpack.c.l.b16 %v796
        %v1076 = vunpack.c.h.b16 %v796
        %v1077 = vunpack.c.l.b16 %v797
        %v1078 = vunpack.c.h.b16 %v797
        %v1079 = vunpack.c.l.b16 %v798
        %v1080 = vunpack.c.h.b16 %v798
        %v1081 = vunpack.c.l.b16 %v799
        %v1082 = vunpack.c.h.b16 %v799
        %v1083 = vunpack.c.l.b16 %v800
        %v1084 = vunpack.c.h.b16 %v800
        %v1085 = vunpack.c.l.b16 %v801
        %v1086 = vunpack.c.h.b16 %v801
        %v1087 = vunpack.c.l.b16 %v802
        %v1088 = vunpack.c.h.b16 %v802
        %v1089 = vunpack.c.l.b16 %v803
        %v1090 = vunpack.c.h.b16 %v803
        %v1091 = vunpack.c.l.b16 %v804
        %v1092 = vunpack.c.h.b16 %v804
        %v1093 = vunpack.c.l.b16 %v805
        %v1094 = vunpack.c.h.b16 %v805
        %v1095 = vunpack.c.l.b16 %v806
        %v1096 = vunpack.c.h.b16 %v806
        %v1097 = vunpack.c.l.b16 %v807
        %v1098 = vunpack.c.h.b16 %v807
        %v1099 = vunpack.c.l.b16 %v808
        %v1100 = vunpack.c.h.b16 %v808
        %v1101 = vunpack.c.l.b16 %v809
        %v1102 = vunpack.c.h.b16 %v809
        %v1103 = vunpack.c.l.b16 %v810
        %v1104 = vunpack.c.h.b16 %v810
        %v1105 = vunpack.c.l.b16 %v811
        %v1106 = vunpack.c.h.b16 %v811
        %v1107 = vunpack.c.l.b16 %v812
        %v1108 = vunpack.c.h.b16 %v812
        %v1109 = vunpack.c.l.b16 %v813
        %v1110 = vunpack.c.h.b16 %v813
        %v1111 = vunpack.c.l.b16 %v814
        %v1112 = vunpack.c.h.b16 %v814
        %v1113 = vunpack.c.l.b16 %v815
        %v1114 = vunpack.c.h.b16 %v815
        %v1115 = vunpack.c.l.b16 %v816
        %v1116 = vunpack.c.h.b16 %v816
        %v1117 = vunpack.c.l.b16 %v817
        %v1118 = vunpack.c.h.b16 %v817
        %v1119 = vunpack.c.l.b16 %v818
        %v1120 = vunpack.c.h.b16 %v818
        %v1121 = vunpack.c.l.b16 %v819
        %v1122 = vunpack.c.h.b16 %v819
        %v1123 = vunpack.c.l.b16 %v820
        %v1124 = vunpack.c.h.b16 %v820
        %v1125 = vunpack.c.l.b16 %v821
        %v1126 = vunpack.c.h.b16 %v821
        %v1127 = vunpack.c.l.b16 %v822
        %v1128 = vunpack.c.h.b16 %v822
        %v1129 = vunpack.c.l.b16 %v823
        %v1130 = vunpack.c.h.b16 %v823
        %v1131 = vunpack.c.l.b16 %v824
        %v1132 = vunpack.c.h.b16 %v824
        %v1133 = vunpack.c.l.b16 %v825
        %v1134 = vunpack.c.h.b16 %v825
        %v1135 = vunpack.c.l.b16 %v826
        %v1136 = vunpack.c.h.b16 %v826
        %v1137 = vunpack.c.l.b16 %v827
        %v1138 = vunpack.c.h.b16 %v827
        %v1139 = vunpack.c.l.b16 %v828
        %v1140 = vunpack.c.h.b16 %v828
        %v1141 = vunpack.c.l.b16 %v829
        %v1142 = vunpack.c.h.b16 %v829
        %v1143 = vunpack.c.l.b16 %v830
        %v1144 = vunpack.c.h.b16 %v830
        %v1145 = vunpack.c.l.b16 %v831
        %v1146 = vunpack.c.h.b16 %v831
        %v1147 = vunpack.c.l.b16 %v832
        %v1148 = vunpack.c.h.b16 %v832
        %v1149 = vunpack.c.l.b16 %v833
        %v1150 = vunpack.c.h.b16 %v833
        %v1151 = vunpack.c.l.b16 %v834
        %v1152 = vunpack.c.h.b16 %v834
        %v1153 = vunpack.c.l.b16 %v835
        %v1154 = vunpack.c.h.b16 %v835
        %v1155 = vunpack.c.l.b16 %v836
        %v1156 = vunpack.c.h.b16 %v836
        %v1157 = vunpack.c.l.b16 %v837
        %v1158 = vunpack.c.h.b16 %v837
        %v1159 = vunpack.c.l.b16 %v838
        %v1160 = vunpack.c.h.b16 %v838
        %v1161 = vpack.c.b16 %v965, %v961
        %v1162 = vpack.c.b16 %v966, %v962
        %v1163 = vpack.c.b16 %v967, %v963
        %v1164 = vpack.c.b16 %v968, %v964
        %v1165 = vpack.c.b16 %v973, %v969
        %v1166 = vpack.c.b16 %v974, %v970
        %v1167 = vpack.c.b16 %v975, %v971
        %v1168 = vpack.c.b16 %v976, %v972
        %v1169 = vpack.c.b16 %v981, %v977
        %v1170 = vpack.c.b16 %v982, %v978
        %v1171 = vpack.c.b16 %v983, %v979
        %v1172 = vpack.c.b16 %v984, %v980
        %v1173 = vpack.c.b16 %v989, %v985
        %v1174 = vpack.c.b16 %v990, %v986
        %v1175 = vpack.c.b16 %v991, %v987
        %v1176 = vpack.c.b16 %v992, %v988
        %v1177 = vpack.c.b16 %v997, %v993
        %v1178 = vpack.c.b16 %v998, %v994
        %v1179 = vpack.c.b16 %v999, %v995
        %v1180 = vpack.c.b16 %v1000, %v996
        %v1181 = vpack.c.b16 %v1005, %v1001
        %v1182 = vpack.c.b16 %v1006, %v1002
        %v1183 = vpack.c.b16 %v1007, %v1003
        %v1184 = vpack.c.b16 %v1008, %v1004
        %v1185 = vpack.c.b16 %v1013, %v1009
        %v1186 = vpack.c.b16 %v1014, %v1010
        %v1187 = vpack.c.b16 %v1015, %v1011
        %v1188 = vpack.c.b16 %v1016, %v1012
        %v1189 = vpack.c.b16 %v1021, %v1017
        %v1190 = vpack.c.b16 %v1022, %v1018
        %v1191 = vpack.c.b16 %v1023, %v1019
        %v1192 = vpack.c.b16 %v1024, %v1020
        %v1193 = vpack.c.b16 %v1029, %v1025
        %v1194 = vpack.c.b16 %v1030, %v1026
        %v1195 = vpack.c.b16 %v1031, %v1027
        %v1196 = vpack.c.b16 %v1032, %v1028
        %v1197 = vpack.c.b16 %v1037, %v1033
        %v1198 = vpack.c.b16 %v1038, %v1034
        %v1199 = vpack.c.b16 %v1039, %v1035
        %v1200 = vpack.c.b16 %v1040, %v1036
        %v1201 = vpack.c.b16 %v1045, %v1041
        %v1202 = vpack.c.b16 %v1046, %v1042
        %v1203 = vpack.c.b16 %v1047, %v1043
        %v1204 = vpack.c.b16 %v1048, %v1044
        %v1205 = vpack.c.b16 %v1053, %v1049
        %v1206 = vpack.c.b16 %v1054, %v1050
        %v1207 = vpack.c.b16 %v1055, %v1051
        %v1208 = vpack.c.b16 %v1056, %v1052
        %v1209 = vpack.c.b16 %v1061, %v1057
        %v1210 = vpack.c.b16 %v1062, %v1058
        %v1211 = vpack.c.b16 %v1063, %v1059
        %v1212 = vpack.c.b16 %v1064, %v1060
        %v1213 = vpack.c.b16 %v1069, %v1065
        %v1214 = vpack.c.b16 %v1070, %v1066
        %v1215 = vpack.c.b16 %v1071, %v1067
        %v1216 = vpack.c.b16 %v1072, %v1068
        %v1217 = vpack.c.b16 %v1077, %v1073
        %v1218 = vpack.c.b16 %v1078, %v1074
        %v1219 = vpack.c.b16 %v1079, %v1075
        %v1220 = vpack.c.b16 %v1080, %v1076
        %v1221 = vpack.c.b16 %v1085, %v1081
        %v1222 = vpack.c.b16 %v1086, %v1082
        %v1223 = vpack.c.b16 %v1087, %v1083
        %v1224 = vpack.c.b16 %v1088, %v1084
        %v1225 = vpack.c.b16 %v1093, %v1089
        %v1226 = vpack.c.b16 %v1094, %v1090
        %v1227 = vpack.c.b16 %v1095, %v1091
        %v1228 = vpack.c.b16 %v1096, %v1092
        %v1229 = vpack.c.b16 %v1101, %v1097
        %v1230 = vpack.c.b16 %v1102, %v1098
        %v1231 = vpack.c.b16 %v1103, %v1099
        %v1232 = vpack.c.b16 %v1104, %v1100
        %v1233 = vpack.c.b16 %v1109, %v1105
        %v1234 = vpack.c.b16 %v1110, %v1106
        %v1235 = vpack.c.b16 %v1111, %v1107
        %v1236 = vpack.c.b16 %v1112, %v1108
        %v1237 = vpack.c.b16 %v1117, %v1113
        %v1238 = vpack.c.b16 %v1118, %v1114
        %v1239 = vpack.c.b16 %v1119, %v1115
        %v1240 = vpack.c.b16 %v1120, %v1116
        %v1241 = vpack.c.b16 %v1125, %v1121
        %v1242 = vpack.c.b16 %v1126, %v1122
        %v1243 = vpack.c.b16 %v1127, %v1123
        %v1244 = vpack.c.b16 %v1128, %v1124
        %v1245 = vpack.c.b16 %v1133, %v1129
        %v1246 = vpack.c.b16 %v1134, %v1130
        %v1247 = vpack.c.b16 %v1135, %v1131
        %v1248 = vpack.c.b16 %v1136, %v1132
        %v1249 = vpack.c.b16 %v1141, %v1137
        %v1250 = vpack.c.b16 %v1142, %v1138
        %v1251 = vpack.c.b16 %v1143, %v1139
        %v1252 = vpack.c.b16 %v1144, %v1140
        %v1253 = vpack.c.b16 %v1149, %v1145
        %v1254 = vpack.c.b16 %v1150, %v1146
        %v1255 = vpack.c.b16 %v1151, %v1147
        %v1256 = vpack.c.b16 %v1152, %v1148
        %v1257 = vpack.c.b16 %v1157, %v1153
        %v1258 = vpack.c.b16 %v1158, %v1154
        %v1259 = vpack.c.b16 %v1159, %v1155
        %v1260 = vpack.c.b16 %v1160, %v1156
        %vm1361 = vcmask 130048
        %v1363 = vsel %vm1361, %v710, 0
        %v1366 = vsel %vm1361, %v714, 0
        %v1369 = vsel %vm1361, %v718, 0
        %v1372 = vsel %vm1361, %v722, 0
        %v1375 = vsel %vm1361, %v726, 0
        %v1378 = vsel %vm1361, %v730, 0
        %v1381 = vsel %vm1361, %v734, 0
        %v1384 = vsel %vm1361, %v738, 0
        %1386 = vmatprep.subr.bf16.mxu0 %v1190
        %1387 = vmatpush1.bf16.msra.mxu0 %v1189
        %1388 = vmatprep.subr.bf16.mxu0 %v1186
        %1389 = vmatpush1.bf16.msra.mxu0 %v1185
        %1390 = vmatprep.subr.bf16.mxu0 %v1182
        %1391 = vmatpush1.bf16.msra.mxu0 %v1181
        %1392 = vmatprep.subr.bf16.mxu0 %v1178
        %1393 = vmatpush1.bf16.msra.mxu0 %v1177
        %1394 = vmatprep.subr.bf16.mxu0 %v1174
        %1395 = vmatpush1.bf16.msra.mxu0 %v1173
        %1396 = vmatprep.subr.bf16.mxu0 %v1170
        %1397 = vmatpush1.bf16.msra.mxu0 %v1169
        %1398 = vmatprep.subr.bf16.mxu0 %v1166
        %1399 = vmatpush1.bf16.msra.mxu0 %v1165
        %1400 = vmatprep.subr.bf16.mxu0 %v1162
        %1401 = vmatpush1.bf16.msra.mxu0 %v1161
        %1402 = vmatprep.subr.bf16.mxu0 %v1222
        %1403 = vmatpush2.bf16.msra.mxu0 %v1221
        %1404 = vmatprep.subr.bf16.mxu0 %v1218
        %1405 = vmatpush2.bf16.msra.mxu0 %v1217
        %1406 = vmatprep.subr.bf16.mxu0 %v1214
        %1407 = vmatpush2.bf16.msra.mxu0 %v1213
        %1408 = vmatprep.subr.bf16.mxu0 %v1210
        %1409 = vmatpush2.bf16.msra.mxu0 %v1209
        %1410 = vmatprep.subr.bf16.mxu0 %v1206
        %1411 = vmatpush2.bf16.msra.mxu0 %v1205
        %1412 = vmatprep.subr.bf16.mxu0 %v1202
        %1413 = vmatpush2.bf16.msra.mxu0 %v1201
        %1414 = vmatprep.subr.bf16.mxu0 %v1198
        %1415 = vmatpush2.bf16.msra.mxu0 %v1197
        %1416 = vmatprep.subr.bf16.mxu0 %v1194
        %1417 = vmatpush2.bf16.msra.mxu0 %v1193
        %1418 = vmatprep.mubr.bf16.mxu0 %v708
        %1419 = vmatmul.mubr.bf16.gmra.mxu0 %v707
        %v1420 = vpop.f32.mrf.mxu0
        %v1421 = vadd.f32 %v844, %v1420
        %v1422 = vpop.f32.mrf.mxu0
        %v1423 = vadd.f32 %v848, %v1422
        %v1424 = vpop.f32.mrf.mxu0
        %v1425 = vadd.f32 %v844, %v1424
        %v1426 = vpop.f32.mrf.mxu0
        %v1427 = vadd.f32 %v848, %v1426
        %1428 = vmatprep.mubr.bf16.mxu0 %v712
        %1429 = vmatmul.mubr.bf16.gmra.mxu0 %v711
        %v1430 = vpop.f32.mrf.mxu0
        %v1431 = vadd.f32 %v844, %v1430
        %v1432 = vpop.f32.mrf.mxu0
        %v1433 = vadd.f32 %v848, %v1432
        %v1434 = vpop.f32.mrf.mxu0
        %v1435 = vadd.f32 %v844, %v1434
        %v1436 = vpop.f32.mrf.mxu0
        %v1437 = vadd.f32 %v848, %v1436
        %1438 = vmatprep.mubr.bf16.mxu0 %v716
        %1439 = vmatmul.mubr.bf16.gmra.mxu0 %v715
        %v1440 = vpop.f32.mrf.mxu0
        %v1441 = vadd.f32 %v844, %v1440
        %v1442 = vpop.f32.mrf.mxu0
        %v1443 = vadd.f32 %v848, %v1442
        %v1444 = vpop.f32.mrf.mxu0
        %v1445 = vadd.f32 %v844, %v1444
        %v1446 = vpop.f32.mrf.mxu0
        %v1447 = vadd.f32 %v848, %v1446
        %1448 = vmatprep.mubr.bf16.mxu0 %v720
        %1449 = vmatmul.mubr.bf16.gmra.mxu0 %v719
        %v1450 = vpop.f32.mrf.mxu0
        %v1451 = vadd.f32 %v844, %v1450
        %v1452 = vpop.f32.mrf.mxu0
        %v1453 = vadd.f32 %v848, %v1452
        %v1454 = vpop.f32.mrf.mxu0
        %v1455 = vadd.f32 %v844, %v1454
        %v1456 = vpop.f32.mrf.mxu0
        %v1457 = vadd.f32 %v848, %v1456
        %1458 = vmatprep.mubr.bf16.mxu0 %v724
        %1459 = vmatmul.mubr.bf16.gmra.mxu0 %v723
        %v1460 = vpop.f32.mrf.mxu0
        %v1461 = vadd.f32 %v844, %v1460
        %v1462 = vpop.f32.mrf.mxu0
        %v1463 = vadd.f32 %v848, %v1462
        %v1464 = vpop.f32.mrf.mxu0
        %v1465 = vadd.f32 %v844, %v1464
        %v1466 = vpop.f32.mrf.mxu0
        %v1467 = vadd.f32 %v848, %v1466
        %1468 = vmatprep.mubr.bf16.mxu0 %v728
        %1469 = vmatmul.mubr.bf16.gmra.mxu0 %v727
        %v1470 = vpop.f32.mrf.mxu0
        %v1471 = vadd.f32 %v844, %v1470
        %v1472 = vpop.f32.mrf.mxu0
        %v1473 = vadd.f32 %v848, %v1472
        %v1474 = vpop.f32.mrf.mxu0
        %v1475 = vadd.f32 %v844, %v1474
        %v1476 = vpop.f32.mrf.mxu0
        %v1477 = vadd.f32 %v848, %v1476
        %1478 = vmatprep.mubr.bf16.mxu0 %v732
        %1479 = vmatmul.mubr.bf16.gmra.mxu0 %v731
        %v1480 = vpop.f32.mrf.mxu0
        %v1481 = vadd.f32 %v844, %v1480
        %v1482 = vpop.f32.mrf.mxu0
        %v1483 = vadd.f32 %v848, %v1482
        %v1484 = vpop.f32.mrf.mxu0
        %v1485 = vadd.f32 %v844, %v1484
        %v1486 = vpop.f32.mrf.mxu0
        %v1487 = vadd.f32 %v848, %v1486
        %1488 = vmatprep.mubr.bf16.mxu0 %v736
        %1489 = vmatmul.mubr.bf16.gmra.mxu0 %v735
        %v1490 = vpop.f32.mrf.mxu0
        %v1491 = vadd.f32 %v844, %v1490
        %v1492 = vpop.f32.mrf.mxu0
        %v1493 = vadd.f32 %v848, %v1492
        %v1494 = vpop.f32.mrf.mxu0
        %v1495 = vadd.f32 %v844, %v1494
        %v1496 = vpop.f32.mrf.mxu0
        %v1497 = vadd.f32 %v848, %v1496
        %1498 = vdwg.mxu0
        %1499 = vmatprep.subr.bf16.mxu0 %v1254
        %1500 = vmatpush1.bf16.msra.mxu0 %v1253
        %1501 = vmatprep.subr.bf16.mxu0 %v1250
        %1502 = vmatpush1.bf16.msra.mxu0 %v1249
        %1503 = vmatprep.subr.bf16.mxu0 %v1246
        %1504 = vmatpush1.bf16.msra.mxu0 %v1245
        %1505 = vmatprep.subr.bf16.mxu0 %v1242
        %1506 = vmatpush1.bf16.msra.mxu0 %v1241
        %1507 = vmatprep.subr.bf16.mxu0 %v1238
        %1508 = vmatpush1.bf16.msra.mxu0 %v1237
        %1509 = vmatprep.subr.bf16.mxu0 %v1234
        %1510 = vmatpush1.bf16.msra.mxu0 %v1233
        %1511 = vmatprep.subr.bf16.mxu0 %v1230
        %1512 = vmatpush1.bf16.msra.mxu0 %v1229
        %1513 = vmatprep.subr.bf16.mxu0 %v1226
        %1514 = vmatpush1.bf16.msra.mxu0 %v1225
        %1515 = vmatprep.subr.bf16.mxu0 0
        %1516 = vmatpush2.bf16.msra.mxu0 0
        %1517 = vmatprep.subr.bf16.mxu0 0
        %1518 = vmatpush2.bf16.msra.mxu0 0
        %1519 = vmatprep.subr.bf16.mxu0 0
        %1520 = vmatpush2.bf16.msra.mxu0 0
        %1521 = vmatprep.subr.bf16.mxu0 0
        %1522 = vmatpush2.bf16.msra.mxu0 0
        %1523 = vmatprep.subr.bf16.mxu0 0
        %1524 = vmatpush2.bf16.msra.mxu0 0
        %1525 = vmatprep.subr.bf16.mxu0 0
        %1526 = vmatpush2.bf16.msra.mxu0 0
        %1527 = vmatprep.subr.bf16.mxu0 0
        %1528 = vmatpush2.bf16.msra.mxu0 0
        %1529 = vmatprep.subr.bf16.mxu0 %v1258
        %1530 = vmatpush2.bf16.msra.mxu0 %v1257
        %1531 = vmatprep.mubr.bf16.mxu0 %v1363
        %1532 = vmatmul.mubr.bf16.gmra.mxu0 %v709
        %v1533 = vpop.f32.mrf.mxu0
        %v1534 = vadd.f32 %v1421, %v1533
        %v1535 = vpop.f32.mrf.mxu0
        %v1536 = vadd.f32 %v1423, %v1535
        %v1537 = vpop.f32.mrf.mxu0
        %v1538 = vadd.f32 %v1425, %v1537
        %v1539 = vpop.f32.mrf.mxu0
        %v1540 = vadd.f32 %v1427, %v1539
        %1541 = vmatprep.mubr.bf16.mxu0 %v1366
        %1542 = vmatmul.mubr.bf16.gmra.mxu0 %v713
        %v1543 = vpop.f32.mrf.mxu0
        %v1544 = vadd.f32 %v1431, %v1543
        %v1545 = vpop.f32.mrf.mxu0
        %v1546 = vadd.f32 %v1433, %v1545
        %v1547 = vpop.f32.mrf.mxu0
        %v1548 = vadd.f32 %v1435, %v1547
        %v1549 = vpop.f32.mrf.mxu0
        %v1550 = vadd.f32 %v1437, %v1549
        %1551 = vmatprep.mubr.bf16.mxu0 %v1369
        %1552 = vmatmul.mubr.bf16.gmra.mxu0 %v717
        %v1553 = vpop.f32.mrf.mxu0
        %v1554 = vadd.f32 %v1441, %v1553
        %v1555 = vpop.f32.mrf.mxu0
        %v1556 = vadd.f32 %v1443, %v1555
        %v1557 = vpop.f32.mrf.mxu0
        %v1558 = vadd.f32 %v1445, %v1557
        %v1559 = vpop.f32.mrf.mxu0
        %v1560 = vadd.f32 %v1447, %v1559
        %1561 = vmatprep.mubr.bf16.mxu0 %v1372
        %1562 = vmatmul.mubr.bf16.gmra.mxu0 %v721
        %v1563 = vpop.f32.mrf.mxu0
        %v1564 = vadd.f32 %v1451, %v1563
        %v1565 = vpop.f32.mrf.mxu0
        %v1566 = vadd.f32 %v1453, %v1565
        %v1567 = vpop.f32.mrf.mxu0
        %v1568 = vadd.f32 %v1455, %v1567
        %v1569 = vpop.f32.mrf.mxu0
        %v1570 = vadd.f32 %v1457, %v1569
        %1571 = vmatprep.mubr.bf16.mxu0 %v1375
        %1572 = vmatmul.mubr.bf16.gmra.mxu0 %v725
        %v1573 = vpop.f32.mrf.mxu0
        %v1574 = vadd.f32 %v1461, %v1573
        %v1575 = vpop.f32.mrf.mxu0
        %v1576 = vadd.f32 %v1463, %v1575
        %v1577 = vpop.f32.mrf.mxu0
        %v1578 = vadd.f32 %v1465, %v1577
        %v1579 = vpop.f32.mrf.mxu0
        %v1580 = vadd.f32 %v1467, %v1579
        %1581 = vmatprep.mubr.bf16.mxu0 %v1378
        %1582 = vmatmul.mubr.bf16.gmra.mxu0 %v729
        %v1583 = vpop.f32.mrf.mxu0
        %v1584 = vadd.f32 %v1471, %v1583
        %v1585 = vpop.f32.mrf.mxu0
        %v1586 = vadd.f32 %v1473, %v1585
        %v1587 = vpop.f32.mrf.mxu0
        %v1588 = vadd.f32 %v1475, %v1587
        %v1589 = vpop.f32.mrf.mxu0
        %v1590 = vadd.f32 %v1477, %v1589
        %1591 = vmatprep.mubr.bf16.mxu0 %v1381
        %1592 = vmatmul.mubr.bf16.gmra.mxu0 %v733
        %v1593 = vpop.f32.mrf.mxu0
        %v1594 = vadd.f32 %v1481, %v1593
        %v1595 = vpop.f32.mrf.mxu0
        %v1596 = vadd.f32 %v1483, %v1595
        %v1597 = vpop.f32.mrf.mxu0
        %v1598 = vadd.f32 %v1485, %v1597
        %v1599 = vpop.f32.mrf.mxu0
        %v1600 = vadd.f32 %v1487, %v1599
        %1601 = vmatprep.mubr.bf16.mxu0 %v1384
        %1602 = vmatmul.mubr.bf16.gmra.mxu0 %v737
        %v1603 = vpop.f32.mrf.mxu0
        %v1604 = vadd.f32 %v1491, %v1603
        %v1605 = vpop.f32.mrf.mxu0
        %v1606 = vadd.f32 %v1493, %v1605
        %v1607 = vpop.f32.mrf.mxu0
        %v1608 = vadd.f32 %v1495, %v1607
        %v1609 = vpop.f32.mrf.mxu0
        %v1610 = vadd.f32 %v1497, %v1609
        %1611 = vdwg.mxu0
        %1612 = vmatprep.subr.bf16.mxu0 %v1192
        %1613 = vmatpush1.bf16.msra.mxu0 %v1191
        %1614 = vmatprep.subr.bf16.mxu0 %v1188
        %1615 = vmatpush1.bf16.msra.mxu0 %v1187
        %1616 = vmatprep.subr.bf16.mxu0 %v1184
        %1617 = vmatpush1.bf16.msra.mxu0 %v1183
        %1618 = vmatprep.subr.bf16.mxu0 %v1180
        %1619 = vmatpush1.bf16.msra.mxu0 %v1179
        %1620 = vmatprep.subr.bf16.mxu0 %v1176
        %1621 = vmatpush1.bf16.msra.mxu0 %v1175
        %1622 = vmatprep.subr.bf16.mxu0 %v1172
        %1623 = vmatpush1.bf16.msra.mxu0 %v1171
        %1624 = vmatprep.subr.bf16.mxu0 %v1168
        %1625 = vmatpush1.bf16.msra.mxu0 %v1167
        %1626 = vmatprep.subr.bf16.mxu0 %v1164
        %1627 = vmatpush1.bf16.msra.mxu0 %v1163
        %1628 = vmatprep.subr.bf16.mxu0 %v1224
        %1629 = vmatpush2.bf16.msra.mxu0 %v1223
        %1630 = vmatprep.subr.bf16.mxu0 %v1220
        %1631 = vmatpush2.bf16.msra.mxu0 %v1219
        %1632 = vmatprep.subr.bf16.mxu0 %v1216
        %1633 = vmatpush2.bf16.msra.mxu0 %v1215
        %1634 = vmatprep.subr.bf16.mxu0 %v1212
        %1635 = vmatpush2.bf16.msra.mxu0 %v1211
        %1636 = vmatprep.subr.bf16.mxu0 %v1208
        %1637 = vmatpush2.bf16.msra.mxu0 %v1207
        %1638 = vmatprep.subr.bf16.mxu0 %v1204
        %1639 = vmatpush2.bf16.msra.mxu0 %v1203
        %1640 = vmatprep.subr.bf16.mxu0 %v1200
        %1641 = vmatpush2.bf16.msra.mxu0 %v1199
        %1642 = vmatprep.subr.bf16.mxu0 %v1196
        %1643 = vmatpush2.bf16.msra.mxu0 %v1195
        %1644 = vmatprep.mubr.bf16.mxu0 %v708
        %1645 = vmatmul.mubr.bf16.gmra.mxu0 %v707
        %v1646 = vpop.f32.mrf.mxu0
        %v1647 = vadd.f32 %v852, %v1646
        %v1648 = vpop.f32.mrf.mxu0
        %v1649 = vadd.f32 %v856, %v1648
        %v1650 = vpop.f32.mrf.mxu0
        %v1651 = vadd.f32 %v852, %v1650
        %v1652 = vpop.f32.mrf.mxu0
        %v1653 = vadd.f32 %v856, %v1652
        %1654 = vmatprep.mubr.bf16.mxu0 %v712
        %1655 = vmatmul.mubr.bf16.gmra.mxu0 %v711
        %v1656 = vpop.f32.mrf.mxu0
        %v1657 = vadd.f32 %v852, %v1656
        %v1658 = vpop.f32.mrf.mxu0
        %v1659 = vadd.f32 %v856, %v1658
        %v1660 = vpop.f32.mrf.mxu0
        %v1661 = vadd.f32 %v852, %v1660
        %v1662 = vpop.f32.mrf.mxu0
        %v1663 = vadd.f32 %v856, %v1662
        %1664 = vmatprep.mubr.bf16.mxu0 %v716
        %1665 = vmatmul.mubr.bf16.gmra.mxu0 %v715
        %v1666 = vpop.f32.mrf.mxu0
        %v1667 = vadd.f32 %v852, %v1666
        %v1668 = vpop.f32.mrf.mxu0
        %v1669 = vadd.f32 %v856, %v1668
        %v1670 = vpop.f32.mrf.mxu0
        %v1671 = vadd.f32 %v852, %v1670
        %v1672 = vpop.f32.mrf.mxu0
        %v1673 = vadd.f32 %v856, %v1672
        %1674 = vmatprep.mubr.bf16.mxu0 %v720
        %1675 = vmatmul.mubr.bf16.gmra.mxu0 %v719
        %v1676 = vpop.f32.mrf.mxu0
        %v1677 = vadd.f32 %v852, %v1676
        %v1678 = vpop.f32.mrf.mxu0
        %v1679 = vadd.f32 %v856, %v1678
        %v1680 = vpop.f32.mrf.mxu0
        %v1681 = vadd.f32 %v852, %v1680
        %v1682 = vpop.f32.mrf.mxu0
        %v1683 = vadd.f32 %v856, %v1682
        %1684 = vmatprep.mubr.bf16.mxu0 %v724
        %1685 = vmatmul.mubr.bf16.gmra.mxu0 %v723
        %v1686 = vpop.f32.mrf.mxu0
        %v1687 = vadd.f32 %v852, %v1686
        %v1688 = vpop.f32.mrf.mxu0
        %v1689 = vadd.f32 %v856, %v1688
        %v1690 = vpop.f32.mrf.mxu0
        %v1691 = vadd.f32 %v852, %v1690
        %v1692 = vpop.f32.mrf.mxu0
        %v1693 = vadd.f32 %v856, %v1692
        %1694 = vmatprep.mubr.bf16.mxu0 %v728
        %1695 = vmatmul.mubr.bf16.gmra.mxu0 %v727
        %v1696 = vpop.f32.mrf.mxu0
        %v1697 = vadd.f32 %v852, %v1696
        %v1698 = vpop.f32.mrf.mxu0
        %v1699 = vadd.f32 %v856, %v1698
        %v1700 = vpop.f32.mrf.mxu0
        %v1701 = vadd.f32 %v852, %v1700
        %v1702 = vpop.f32.mrf.mxu0
        %v1703 = vadd.f32 %v856, %v1702
        %1704 = vmatprep.mubr.bf16.mxu0 %v732
        %1705 = vmatmul.mubr.bf16.gmra.mxu0 %v731
        %v1706 = vpop.f32.mrf.mxu0
        %v1707 = vadd.f32 %v852, %v1706
        %v1708 = vpop.f32.mrf.mxu0
        %v1709 = vadd.f32 %v856, %v1708
        %v1710 = vpop.f32.mrf.mxu0
        %v1711 = vadd.f32 %v852, %v1710
        %v1712 = vpop.f32.mrf.mxu0
        %v1713 = vadd.f32 %v856, %v1712
        %1714 = vmatprep.mubr.bf16.mxu0 %v736
        %1715 = vmatmul.mubr.bf16.gmra.mxu0 %v735
        %v1716 = vpop.f32.mrf.mxu0
        %v1717 = vadd.f32 %v852, %v1716
        %v1718 = vpop.f32.mrf.mxu0
        %v1719 = vadd.f32 %v856, %v1718
        %v1720 = vpop.f32.mrf.mxu0
        %v1721 = vadd.f32 %v852, %v1720
        %v1722 = vpop.f32.mrf.mxu0
        %v1723 = vadd.f32 %v856, %v1722
        %1724 = vdwg.mxu0
        %1725 = vmatprep.subr.bf16.mxu0 %v1256
        %1726 = vmatpush1.bf16.msra.mxu0 %v1255
        %1727 = vmatprep.subr.bf16.mxu0 %v1252
        %1728 = vmatpush1.bf16.msra.mxu0 %v1251
        %1729 = vmatprep.subr.bf16.mxu0 %v1248
        %1730 = vmatpush1.bf16.msra.mxu0 %v1247
        %1731 = vmatprep.subr.bf16.mxu0 %v1244
        %1732 = vmatpush1.bf16.msra.mxu0 %v1243
        %1733 = vmatprep.subr.bf16.mxu0 %v1240
        %1734 = vmatpush1.bf16.msra.mxu0 %v1239
        %1735 = vmatprep.subr.bf16.mxu0 %v1236
        %1736 = vmatpush1.bf16.msra.mxu0 %v1235
        %1737 = vmatprep.subr.bf16.mxu0 %v1232
        %1738 = vmatpush1.bf16.msra.mxu0 %v1231
        %1739 = vmatprep.subr.bf16.mxu0 %v1228
        %1740 = vmatpush1.bf16.msra.mxu0 %v1227
        %1741 = vmatprep.subr.bf16.mxu0 0
        %1742 = vmatpush2.bf16.msra.mxu0 0
        %1743 = vmatprep.subr.bf16.mxu0 0
        %1744 = vmatpush2.bf16.msra.mxu0 0
        %1745 = vmatprep.subr.bf16.mxu0 0
        %1746 = vmatpush2.bf16.msra.mxu0 0
        %1747 = vmatprep.subr.bf16.mxu0 0
        %1748 = vmatpush2.bf16.msra.mxu0 0
        %1749 = vmatprep.subr.bf16.mxu0 0
        %1750 = vmatpush2.bf16.msra.mxu0 0
        %1751 = vmatprep.subr.bf16.mxu0 0
        %1752 = vmatpush2.bf16.msra.mxu0 0
        %1753 = vmatprep.subr.bf16.mxu0 0
        %1754 = vmatpush2.bf16.msra.mxu0 0
        %1755 = vmatprep.subr.bf16.mxu0 %v1260
        %1756 = vmatpush2.bf16.msra.mxu0 %v1259
        %1757 = vmatprep.mubr.bf16.mxu0 %v1363
        %1758 = vmatmul.mubr.bf16.gmra.mxu0 %v709
        %v1759 = vpop.f32.mrf.mxu0
        %v1760 = vadd.f32 %v1647, %v1759
        %v1761 = vpop.f32.mrf.mxu0
        %v1762 = vadd.f32 %v1649, %v1761
        %v1763 = vpop.f32.mrf.mxu0
        %v1764 = vadd.f32 %v1651, %v1763
        %v1765 = vpop.f32.mrf.mxu0
        %v1766 = vadd.f32 %v1653, %v1765
        %1767 = vmatprep.mubr.bf16.mxu0 %v1366
        %1768 = vmatmul.mubr.bf16.gmra.mxu0 %v713
        %v1769 = vpop.f32.mrf.mxu0
        %v1770 = vadd.f32 %v1657, %v1769
        %v1771 = vpop.f32.mrf.mxu0
        %v1772 = vadd.f32 %v1659, %v1771
        %v1773 = vpop.f32.mrf.mxu0
        %v1774 = vadd.f32 %v1661, %v1773
        %v1775 = vpop.f32.mrf.mxu0
        %v1776 = vadd.f32 %v1663, %v1775
        %1777 = vmatprep.mubr.bf16.mxu0 %v1369
        %1778 = vmatmul.mubr.bf16.gmra.mxu0 %v717
        %v1779 = vpop.f32.mrf.mxu0
        %v1780 = vadd.f32 %v1667, %v1779
        %v1781 = vpop.f32.mrf.mxu0
        %v1782 = vadd.f32 %v1669, %v1781
        %v1783 = vpop.f32.mrf.mxu0
        %v1784 = vadd.f32 %v1671, %v1783
        %v1785 = vpop.f32.mrf.mxu0
        %v1786 = vadd.f32 %v1673, %v1785
        %1787 = vmatprep.mubr.bf16.mxu0 %v1372
        %1788 = vmatmul.mubr.bf16.gmra.mxu0 %v721
        %v1789 = vpop.f32.mrf.mxu0
        %v1790 = vadd.f32 %v1677, %v1789
        %v1791 = vpop.f32.mrf.mxu0
        %v1792 = vadd.f32 %v1679, %v1791
        %v1793 = vpop.f32.mrf.mxu0
        %v1794 = vadd.f32 %v1681, %v1793
        %v1795 = vpop.f32.mrf.mxu0
        %v1796 = vadd.f32 %v1683, %v1795
        %1797 = vmatprep.mubr.bf16.mxu0 %v1375
        %1798 = vmatmul.mubr.bf16.gmra.mxu0 %v725
        %v1799 = vpop.f32.mrf.mxu0
        %v1800 = vadd.f32 %v1687, %v1799
        %v1801 = vpop.f32.mrf.mxu0
        %v1802 = vadd.f32 %v1689, %v1801
        %v1803 = vpop.f32.mrf.mxu0
        %v1804 = vadd.f32 %v1691, %v1803
        %v1805 = vpop.f32.mrf.mxu0
        %v1806 = vadd.f32 %v1693, %v1805
        %1807 = vmatprep.mubr.bf16.mxu0 %v1378
        %1808 = vmatmul.mubr.bf16.gmra.mxu0 %v729
        %v1809 = vpop.f32.mrf.mxu0
        %v1810 = vadd.f32 %v1697, %v1809
        %v1811 = vpop.f32.mrf.mxu0
        %v1812 = vadd.f32 %v1699, %v1811
        %v1813 = vpop.f32.mrf.mxu0
        %v1814 = vadd.f32 %v1701, %v1813
        %v1815 = vpop.f32.mrf.mxu0
        %v1816 = vadd.f32 %v1703, %v1815
        %1817 = vmatprep.mubr.bf16.mxu0 %v1381
        %1818 = vmatmul.mubr.bf16.gmra.mxu0 %v733
        %v1819 = vpop.f32.mrf.mxu0
        %v1820 = vadd.f32 %v1707, %v1819
        %v1821 = vpop.f32.mrf.mxu0
        %v1822 = vadd.f32 %v1709, %v1821
        %v1823 = vpop.f32.mrf.mxu0
        %v1824 = vadd.f32 %v1711, %v1823
        %v1825 = vpop.f32.mrf.mxu0
        %v1826 = vadd.f32 %v1713, %v1825
        %1827 = vmatprep.mubr.bf16.mxu0 %v1384
        %1828 = vmatmul.mubr.bf16.gmra.mxu0 %v737
        %v1829 = vpop.f32.mrf.mxu0
        %v1830 = vadd.f32 %v1717, %v1829
        %v1831 = vpop.f32.mrf.mxu0
        %v1832 = vadd.f32 %v1719, %v1831
        %v1833 = vpop.f32.mrf.mxu0
        %v1834 = vadd.f32 %v1721, %v1833
        %v1835 = vpop.f32.mrf.mxu0
        %v1836 = vadd.f32 %v1723, %v1835
        %1837 = vdwg.mxu0
        %v1838 = vmax.f32 %v1534, 0.0
        %v1839 = vmax.f32 %v1536, 0.0
        %v1840 = vmax.f32 %v1760, 0.0
        %v1841 = vmax.f32 %v1762, 0.0
        %v1842 = vmax.f32 %v1538, 0.0
        %v1843 = vmax.f32 %v1540, 0.0
        %v1844 = vmax.f32 %v1764, 0.0
        %v1845 = vmax.f32 %v1766, 0.0
        %v1846 = vmax.f32 %v1544, 0.0
        %v1847 = vmax.f32 %v1546, 0.0
        %v1848 = vmax.f32 %v1770, 0.0
        %v1849 = vmax.f32 %v1772, 0.0
        %v1850 = vmax.f32 %v1548, 0.0
        %v1851 = vmax.f32 %v1550, 0.0
        %v1852 = vmax.f32 %v1774, 0.0
        %v1853 = vmax.f32 %v1776, 0.0
        %v1854 = vmax.f32 %v1554, 0.0
        %v1855 = vmax.f32 %v1556, 0.0
        %v1856 = vmax.f32 %v1780, 0.0
        %v1857 = vmax.f32 %v1782, 0.0
        %v1858 = vmax.f32 %v1558, 0.0
        %v1859 = vmax.f32 %v1560, 0.0
        %v1860 = vmax.f32 %v1784, 0.0
        %v1861 = vmax.f32 %v1786, 0.0
        %v1862 = vmax.f32 %v1564, 0.0
        %v1863 = vmax.f32 %v1566, 0.0
        %v1864 = vmax.f32 %v1790, 0.0
        %v1865 = vmax.f32 %v1792, 0.0
        %v1866 = vmax.f32 %v1568, 0.0
        %v1867 = vmax.f32 %v1570, 0.0
        %v1868 = vmax.f32 %v1794, 0.0
        %v1869 = vmax.f32 %v1796, 0.0
        %v1870 = vmax.f32 %v1574, 0.0
        %v1871 = vmax.f32 %v1576, 0.0
        %v1872 = vmax.f32 %v1800, 0.0
        %v1873 = vmax.f32 %v1802, 0.0
        %v1874 = vmax.f32 %v1578, 0.0
        %v1875 = vmax.f32 %v1580, 0.0
        %v1876 = vmax.f32 %v1804, 0.0
        %v1877 = vmax.f32 %v1806, 0.0
        %v1878 = vmax.f32 %v1584, 0.0
        %v1879 = vmax.f32 %v1586, 0.0
        %v1880 = vmax.f32 %v1810, 0.0
        %v1881 = vmax.f32 %v1812, 0.0
        %v1882 = vmax.f32 %v1588, 0.0
        %v1883 = vmax.f32 %v1590, 0.0
        %v1884 = vmax.f32 %v1814, 0.0
        %v1885 = vmax.f32 %v1816, 0.0
        %v1886 = vmax.f32 %v1594, 0.0
        %v1887 = vmax.f32 %v1596, 0.0
        %v1888 = vmax.f32 %v1820, 0.0
        %v1889 = vmax.f32 %v1822, 0.0
        %v1890 = vmax.f32 %v1598, 0.0
        %v1891 = vmax.f32 %v1600, 0.0
        %v1892 = vmax.f32 %v1824, 0.0
        %v1893 = vmax.f32 %v1826, 0.0
        %v1894 = vmax.f32 %v1604, 0.0
        %v1895 = vmax.f32 %v1606, 0.0
        %v1896 = vmax.f32 %v1830, 0.0
        %v1897 = vmax.f32 %v1832, 0.0
        %v1898 = vmax.f32 %v1608, 0.0
        %v1899 = vmax.f32 %v1610, 0.0
        %v1900 = vmax.f32 %v1834, 0.0
        %v1901 = vmax.f32 %v1836, 0.0
        %v1902 = vpack.c.bf16 %v1842, %v1838
        %v1903 = vpack.c.bf16 %v1843, %v1839
        %v1904 = vpack.c.bf16 %v1844, %v1840
        %v1905 = vpack.c.bf16 %v1845, %v1841
        %v1906 = vpack.c.bf16 %v1850, %v1846
        %v1907 = vpack.c.bf16 %v1851, %v1847
        %v1908 = vpack.c.bf16 %v1852, %v1848
        %v1909 = vpack.c.bf16 %v1853, %v1849
        %v1910 = vpack.c.bf16 %v1858, %v1854
        %v1911 = vpack.c.bf16 %v1859, %v1855
        %v1912 = vpack.c.bf16 %v1860, %v1856
        %v1913 = vpack.c.bf16 %v1861, %v1857
        %v1914 = vpack.c.bf16 %v1866, %v1862
        %v1915 = vpack.c.bf16 %v1867, %v1863
        %v1916 = vpack.c.bf16 %v1868, %v1864
        %v1917 = vpack.c.bf16 %v1869, %v1865
        %v1918 = vpack.c.bf16 %v1874, %v1870
        %v1919 = vpack.c.bf16 %v1875, %v1871
        %v1920 = vpack.c.bf16 %v1876, %v1872
        %v1921 = vpack.c.bf16 %v1877, %v1873
        %v1922 = vpack.c.bf16 %v1882, %v1878
        %v1923 = vpack.c.bf16 %v1883, %v1879
        %v1924 = vpack.c.bf16 %v1884, %v1880
        %v1925 = vpack.c.bf16 %v1885, %v1881
        %v1926 = vpack.c.bf16 %v1890, %v1886
        %v1927 = vpack.c.bf16 %v1891, %v1887
        %v1928 = vpack.c.bf16 %v1892, %v1888
        %v1929 = vpack.c.bf16 %v1893, %v1889
        %v1930 = vpack.c.bf16 %v1898, %v1894
        %v1931 = vpack.c.bf16 %v1899, %v1895
        %v1932 = vpack.c.bf16 %v1900, %v1896
        %v1933 = vpack.c.bf16 %v1901, %v1897
        %v1934 = vld [vmem:[%s5] sm:$0xf]
        %v1935 = vld [vmem:[%s5 + $0x4] sm:$0xf]
        %v1936 = vld [vmem:[%s5 + $0x8] sm:$0xf]
        %v1937 = vld [vmem:[%s5 + $0xc] sm:$0xf]
        %v1938 = vld [vmem:[%s5 + $0x10] sm:$0xf]
        %v1939 = vld [vmem:[%s5 + $0x14] sm:$0xf]
        %v1940 = vld [vmem:[%s5 + $0x18] sm:$0xf]
        %v1941 = vld [vmem:[%s5 + $0x1c] sm:$0xf]
        %v1942 = vld [vmem:[%s5 + $0x20] sm:$0xf]
        %v1943 = vld [vmem:[%s5 + $0x24] sm:$0xf]
        %v1944 = vld [vmem:[%s5 + $0x28] sm:$0xf]
        %v1945 = vld [vmem:[%s5 + $0x2c] sm:$0xf]
        %v1946 = vld [vmem:[%s5 + $0x30] sm:$0xf]
        %v1947 = vld [vmem:[%s5 + $0x34] sm:$0xf]
        %v1948 = vld [vmem:[%s5 + $0x38] sm:$0xf]
        %v1949 = vld [vmem:[%s5 + $0x3c] sm:$0xf]
        %v1950 = vld [vmem:[%s5 + $0x40] sm:$0xf]
        %v1951 = vld [vmem:[%s5 + $0x44] sm:$0xf]
        %v1952 = vld [vmem:[%s5 + $0x48] sm:$0xf]
        %v1953 = vld [vmem:[%s5 + $0x4c] sm:$0xf]
        %v1954 = vld [vmem:[%s5 + $0x50] sm:$0xf]
        %v1955 = vld [vmem:[%s5 + $0x54] sm:$0xf]
        %v1956 = vld [vmem:[%s5 + $0x58] sm:$0xf]
        %v1957 = vld [vmem:[%s5 + $0x5c] sm:$0xf]
        %v1958 = vld [vmem:[%s5 + $0x60] sm:$0xf]
        %v1959 = vld [vmem:[%s5 + $0x64] sm:$0xf]
        %v1960 = vld [vmem:[%s5 + $0x68] sm:$0xf]
        %v1961 = vld [vmem:[%s5 + $0x6c] sm:$0xf]
        %v1962 = vld [vmem:[%s5 + $0x70] sm:$0xf]
        %v1963 = vld [vmem:[%s5 + $0x74] sm:$0xf]
        %v1964 = vld [vmem:[%s5 + $0x78] sm:$0xf]
        %v1965 = vld [vmem:[%s5 + $0x7c] sm:$0xf]
        %v1966 = vld [vmem:[%s5 + $0x80] sm:$0xf]
        %v1967 = vld [vmem:[%s5 + $0x84] sm:$0xf]
        %v1968 = vld [vmem:[%s5 + $0x88] sm:$0xf]
        %v1969 = vld [vmem:[%s5 + $0x8c] sm:$0xf]
        %v1970 = vld [vmem:[%s5 + $0x90] sm:$0xf]
        %v1971 = vld [vmem:[%s5 + $0x94] sm:$0xf]
        %v1972 = vld [vmem:[%s5 + $0x98] sm:$0xf]
        %v1973 = vld [vmem:[%s5 + $0x9c] sm:$0xf]
        %v1974 = vld [vmem:[%s5 + $0xa0] sm:$0xf]
        %v1975 = vld [vmem:[%s5 + $0xa4] sm:$0xf]
        %v1976 = vld [vmem:[%s5 + $0xa8] sm:$0xf]
        %v1977 = vld [vmem:[%s5 + $0xac] sm:$0xf]
        %v1978 = vld [vmem:[%s5 + $0xb0] sm:$0xf]
        %v1979 = vld [vmem:[%s5 + $0xb4] sm:$0xf]
        %v1980 = vld [vmem:[%s5 + $0xb8] sm:$0xf]
        %v1981 = vld [vmem:[%s5 + $0xbc] sm:$0xf]
        %v1982 = vld [vmem:[%s5 + $0xc0] sm:$0xf]
        %v1983 = vld [vmem:[%s5 + $0xc4] sm:$0xf]
        %v1984 = vld [vmem:[%s6] sm:$0x1]
        %v1986 = vlaneseq
        %v1987 = vshrl.u32 %v1986, 7
        %v1988 = vsub.s32 0, %v1987
        %v1989 = vrot.slane %v1984, %v1988
        %v2041 = vunpack.c.l.b16 %v1934
        %v2042 = vunpack.c.l.b16 %v1935
        %v2043 = vunpack.c.l.b16 %v1936
        %v2044 = vunpack.c.l.b16 %v1937
        %v2045 = vunpack.c.l.b16 %v1938
        %v2046 = vunpack.c.l.b16 %v1939
        %v2047 = vunpack.c.l.b16 %v1940
        %v2048 = vunpack.c.l.b16 %v1941
        %v2049 = vunpack.c.l.b16 %v1942
        %v2050 = vunpack.c.l.b16 %v1943
        %v2051 = vunpack.c.l.b16 %v1944
        %v2052 = vunpack.c.l.b16 %v1945
        %v2053 = vunpack.c.l.b16 %v1946
        %v2054 = vunpack.c.l.b16 %v1947
        %v2055 = vunpack.c.l.b16 %v1948
        %v2056 = vunpack.c.l.b16 %v1949
        %v2057 = vunpack.c.l.b16 %v1950
        %v2058 = vunpack.c.l.b16 %v1951
        %v2059 = vunpack.c.l.b16 %v1952
        %v2060 = vunpack.c.l.b16 %v1953
        %v2061 = vunpack.c.l.b16 %v1954
        %v2062 = vunpack.c.l.b16 %v1955
        %v2063 = vunpack.c.l.b16 %v1956
        %v2064 = vunpack.c.l.b16 %v1957
        %v2065 = vunpack.c.l.b16 %v1958
        %v2066 = vunpack.c.l.b16 %v1959
        %v2067 = vunpack.c.l.b16 %v1960
        %v2068 = vunpack.c.l.b16 %v1961
        %v2069 = vunpack.c.l.b16 %v1962
        %v2070 = vunpack.c.l.b16 %v1963
        %v2071 = vunpack.c.l.b16 %v1964
        %v2072 = vunpack.c.l.b16 %v1965
        %v2073 = vunpack.c.l.b16 %v1966
        %v2074 = vunpack.c.l.b16 %v1967
        %v2075 = vunpack.c.l.b16 %v1968
        %v2076 = vunpack.c.l.b16 %v1969
        %v2077 = vunpack.c.l.b16 %v1970
        %v2078 = vunpack.c.l.b16 %v1971
        %v2079 = vunpack.c.l.b16 %v1972
        %v2080 = vunpack.c.l.b16 %v1973
        %v2081 = vunpack.c.l.b16 %v1974
        %v2082 = vunpack.c.l.b16 %v1975
        %v2083 = vunpack.c.l.b16 %v1976
        %v2084 = vunpack.c.l.b16 %v1977
        %v2085 = vunpack.c.l.b16 %v1978
        %v2086 = vunpack.c.l.b16 %v1979
        %v2087 = vunpack.c.l.b16 %v1980
        %v2088 = vunpack.c.l.b16 %v1981
        %v2089 = vunpack.c.l.b16 %v1982
        %v2090 = vunpack.c.l.b16 %v1983
        %v2091 = vpack.c.b16 %v2042, %v2041
        %v2092 = vpack.c.b16 %v2044, %v2043
        %v2093 = vpack.c.b16 %v2046, %v2045
        %v2094 = vpack.c.b16 %v2048, %v2047
        %v2095 = vpack.c.b16 %v2050, %v2049
        %v2096 = vpack.c.b16 %v2052, %v2051
        %v2097 = vpack.c.b16 %v2054, %v2053
        %v2098 = vpack.c.b16 %v2056, %v2055
        %v2099 = vpack.c.b16 %v2058, %v2057
        %v2100 = vpack.c.b16 %v2060, %v2059
        %v2101 = vpack.c.b16 %v2062, %v2061
        %v2102 = vpack.c.b16 %v2064, %v2063
        %v2103 = vpack.c.b16 %v2066, %v2065
        %v2104 = vpack.c.b16 %v2068, %v2067
        %v2105 = vpack.c.b16 %v2070, %v2069
        %v2106 = vpack.c.b16 %v2072, %v2071
        %v2107 = vpack.c.b16 %v2074, %v2073
        %v2108 = vpack.c.b16 %v2076, %v2075
        %v2109 = vpack.c.b16 %v2078, %v2077
        %v2110 = vpack.c.b16 %v2080, %v2079
        %v2111 = vpack.c.b16 %v2082, %v2081
        %v2112 = vpack.c.b16 %v2084, %v2083
        %v2113 = vpack.c.b16 %v2086, %v2085
        %v2114 = vpack.c.b16 %v2088, %v2087
        %v2115 = vpack.c.b16 %v2090, %v2089
        %v2142 = vsel %vm1361, %v1905, 0
        %v2145 = vsel %vm1361, %v1909, 0
        %v2148 = vsel %vm1361, %v1913, 0
        %v2151 = vsel %vm1361, %v1917, 0
        %v2154 = vsel %vm1361, %v1921, 0
        %v2157 = vsel %vm1361, %v1925, 0
        %v2160 = vsel %vm1361, %v1929, 0
        %v2163 = vsel %vm1361, %v1933, 0
        %2165 = vmatprep.subr.bf16.mxu0 0
        %2166 = vmatpush1.bf16.msra.mxu0 %v2098
        %2167 = vmatprep.subr.bf16.mxu0 0
        %2168 = vmatpush1.bf16.msra.mxu0 %v2097
        %2169 = vmatprep.subr.bf16.mxu0 0
        %2170 = vmatpush1.bf16.msra.mxu0 %v2096
        %2171 = vmatprep.subr.bf16.mxu0 0
        %2172 = vmatpush1.bf16.msra.mxu0 %v2095
        %2173 = vmatprep.subr.bf16.mxu0 0
        %2174 = vmatpush1.bf16.msra.mxu0 %v2094
        %2175 = vmatprep.subr.bf16.mxu0 0
        %2176 = vmatpush1.bf16.msra.mxu0 %v2093
        %2177 = vmatprep.subr.bf16.mxu0 0
        %2178 = vmatpush1.bf16.msra.mxu0 %v2092
        %2179 = vmatprep.subr.bf16.mxu0 0
        %2180 = vmatpush1.bf16.msra.mxu0 %v2091
        %2181 = vmatprep.subr.bf16.mxu0 0
        %2182 = vmatpush2.bf16.msra.mxu0 %v2106
        %2183 = vmatprep.subr.bf16.mxu0 0
        %2184 = vmatpush2.bf16.msra.mxu0 %v2105
        %2185 = vmatprep.subr.bf16.mxu0 0
        %2186 = vmatpush2.bf16.msra.mxu0 %v2104
        %2187 = vmatprep.subr.bf16.mxu0 0
        %2188 = vmatpush2.bf16.msra.mxu0 %v2103
        %2189 = vmatprep.subr.bf16.mxu0 0
        %2190 = vmatpush2.bf16.msra.mxu0 %v2102
        %2191 = vmatprep.subr.bf16.mxu0 0
        %2192 = vmatpush2.bf16.msra.mxu0 %v2101
        %2193 = vmatprep.subr.bf16.mxu0 0
        %2194 = vmatpush2.bf16.msra.mxu0 %v2100
        %2195 = vmatprep.subr.bf16.mxu0 0
        %2196 = vmatpush2.bf16.msra.mxu0 %v2099
        %2197 = vmatprep.mubr.bf16.mxu0 %v1903
        %2198 = vmatmul.mubr.bf16.gmra.mxu0 %v1902
        %v2199 = vpop.f32.mrf.mxu0
        %v2200 = vadd.f32 %v1989, %v2199
        %v2201 = vpop.f32.mrf.mxu0
        %v2202 = vpop.f32.mrf.mxu0
        %v2203 = vadd.f32 %v1989, %v2202
        %v2204 = vpop.f32.mrf.mxu0
        %2205 = vmatprep.mubr.bf16.mxu0 %v1907
        %2206 = vmatmul.mubr.bf16.gmra.mxu0 %v1906
        %v2207 = vpop.f32.mrf.mxu0
        %v2208 = vadd.f32 %v1989, %v2207
        %v2209 = vpop.f32.mrf.mxu0
        %v2210 = vpop.f32.mrf.mxu0
        %v2211 = vadd.f32 %v1989, %v2210
        %v2212 = vpop.f32.mrf.mxu0
        %2213 = vmatprep.mubr.bf16.mxu0 %v1911
        %2214 = vmatmul.mubr.bf16.gmra.mxu0 %v1910
        %v2215 = vpop.f32.mrf.mxu0
        %v2216 = vadd.f32 %v1989, %v2215
        %v2217 = vpop.f32.mrf.mxu0
        %v2218 = vpop.f32.mrf.mxu0
        %v2219 = vadd.f32 %v1989, %v2218
        %v2220 = vpop.f32.mrf.mxu0
        %2221 = vmatprep.mubr.bf16.mxu0 %v1915
        %2222 = vmatmul.mubr.bf16.gmra.mxu0 %v1914
        %v2223 = vpop.f32.mrf.mxu0
        %v2224 = vadd.f32 %v1989, %v2223
        %v2225 = vpop.f32.mrf.mxu0
        %v2226 = vpop.f32.mrf.mxu0
        %v2227 = vadd.f32 %v1989, %v2226
        %v2228 = vpop.f32.mrf.mxu0
        %2229 = vmatprep.mubr.bf16.mxu0 %v1919
        %2230 = vmatmul.mubr.bf16.gmra.mxu0 %v1918
        %v2231 = vpop.f32.mrf.mxu0
        %v2232 = vadd.f32 %v1989, %v2231
        %v2233 = vpop.f32.mrf.mxu0
        %v2234 = vpop.f32.mrf.mxu0
        %v2235 = vadd.f32 %v1989, %v2234
        %v2236 = vpop.f32.mrf.mxu0
        %2237 = vmatprep.mubr.bf16.mxu0 %v1923
        %2238 = vmatmul.mubr.bf16.gmra.mxu0 %v1922
        %v2239 = vpop.f32.mrf.mxu0
        %v2240 = vadd.f32 %v1989, %v2239
        %v2241 = vpop.f32.mrf.mxu0
        %v2242 = vpop.f32.mrf.mxu0
        %v2243 = vadd.f32 %v1989, %v2242
        %v2244 = vpop.f32.mrf.mxu0
        %2245 = vmatprep.mubr.bf16.mxu0 %v1927
        %2246 = vmatmul.mubr.bf16.gmra.mxu0 %v1926
        %v2247 = vpop.f32.mrf.mxu0
        %v2248 = vadd.f32 %v1989, %v2247
        %v2249 = vpop.f32.mrf.mxu0
        %v2250 = vpop.f32.mrf.mxu0
        %v2251 = vadd.f32 %v1989, %v2250
        %v2252 = vpop.f32.mrf.mxu0
        %2253 = vmatprep.mubr.bf16.mxu0 %v1931
        %2254 = vmatmul.mubr.bf16.gmra.mxu0 %v1930
        %v2255 = vpop.f32.mrf.mxu0
        %v2256 = vadd.f32 %v1989, %v2255
        %v2257 = vpop.f32.mrf.mxu0
        %v2258 = vpop.f32.mrf.mxu0
        %v2259 = vadd.f32 %v1989, %v2258
        %v2260 = vpop.f32.mrf.mxu0
        %2261 = vdwg.mxu0
        %2262 = vmatprep.subr.bf16.mxu0 0
        %2263 = vmatpush1.bf16.msra.mxu0 %v2114
        %2264 = vmatprep.subr.bf16.mxu0 0
        %2265 = vmatpush1.bf16.msra.mxu0 %v2113
        %2266 = vmatprep.subr.bf16.mxu0 0
        %2267 = vmatpush1.bf16.msra.mxu0 %v2112
        %2268 = vmatprep.subr.bf16.mxu0 0
        %2269 = vmatpush1.bf16.msra.mxu0 %v2111
        %2270 = vmatprep.subr.bf16.mxu0 0
        %2271 = vmatpush1.bf16.msra.mxu0 %v2110
        %2272 = vmatprep.subr.bf16.mxu0 0
        %2273 = vmatpush1.bf16.msra.mxu0 %v2109
        %2274 = vmatprep.subr.bf16.mxu0 0
        %2275 = vmatpush1.bf16.msra.mxu0 %v2108
        %2276 = vmatprep.subr.bf16.mxu0 0
        %2277 = vmatpush1.bf16.msra.mxu0 %v2107
        %2278 = vmatprep.subr.bf16.mxu0 0
        %2279 = vmatpush2.bf16.msra.mxu0 0
        %2280 = vmatprep.subr.bf16.mxu0 0
        %2281 = vmatpush2.bf16.msra.mxu0 0
        %2282 = vmatprep.subr.bf16.mxu0 0
        %2283 = vmatpush2.bf16.msra.mxu0 0
        %2284 = vmatprep.subr.bf16.mxu0 0
        %2285 = vmatpush2.bf16.msra.mxu0 0
        %2286 = vmatprep.subr.bf16.mxu0 0
        %2287 = vmatpush2.bf16.msra.mxu0 0
        %2288 = vmatprep.subr.bf16.mxu0 0
        %2289 = vmatpush2.bf16.msra.mxu0 0
        %2290 = vmatprep.subr.bf16.mxu0 0
        %2291 = vmatpush2.bf16.msra.mxu0 0
        %2292 = vmatprep.subr.bf16.mxu0 0
        %2293 = vmatpush2.bf16.msra.mxu0 %v2115
        %2294 = vmatprep.mubr.bf16.mxu0 %v2142
        %2295 = vmatmul.mubr.bf16.gmra.mxu0 %v1904
        %v2296 = vpop.f32.mrf.mxu0
        %v2297 = vadd.f32 %v2200, %v2296
        %v2298 = vpop.f32.mrf.mxu0
        %v2299 = vpop.f32.mrf.mxu0
        %v2300 = vadd.f32 %v2203, %v2299
        %v2301 = vpop.f32.mrf.mxu0
        %2302 = vmatprep.mubr.bf16.mxu0 %v2145
        %2303 = vmatmul.mubr.bf16.gmra.mxu0 %v1908
        %v2304 = vpop.f32.mrf.mxu0
        %v2305 = vadd.f32 %v2208, %v2304
        %v2306 = vpop.f32.mrf.mxu0
        %v2307 = vpop.f32.mrf.mxu0
        %v2308 = vadd.f32 %v2211, %v2307
        %v2309 = vpop.f32.mrf.mxu0
        %2310 = vmatprep.mubr.bf16.mxu0 %v2148
        %2311 = vmatmul.mubr.bf16.gmra.mxu0 %v1912
        %v2312 = vpop.f32.mrf.mxu0
        %v2313 = vadd.f32 %v2216, %v2312
        %v2314 = vpop.f32.mrf.mxu0
        %v2315 = vpop.f32.mrf.mxu0
        %v2316 = vadd.f32 %v2219, %v2315
        %v2317 = vpop.f32.mrf.mxu0
        %2318 = vmatprep.mubr.bf16.mxu0 %v2151
        %2319 = vmatmul.mubr.bf16.gmra.mxu0 %v1916
        %v2320 = vpop.f32.mrf.mxu0
        %v2321 = vadd.f32 %v2224, %v2320
        %v2322 = vpop.f32.mrf.mxu0
        %v2323 = vpop.f32.mrf.mxu0
        %v2324 = vadd.f32 %v2227, %v2323
        %v2325 = vpop.f32.mrf.mxu0
        %2326 = vmatprep.mubr.bf16.mxu0 %v2154
        %2327 = vmatmul.mubr.bf16.gmra.mxu0 %v1920
        %v2328 = vpop.f32.mrf.mxu0
        %v2329 = vadd.f32 %v2232, %v2328
        %v2330 = vpop.f32.mrf.mxu0
        %v2331 = vpop.f32.mrf.mxu0
        %v2332 = vadd.f32 %v2235, %v2331
        %v2333 = vpop.f32.mrf.mxu0
        %2334 = vmatprep.mubr.bf16.mxu0 %v2157
        %2335 = vmatmul.mubr.bf16.gmra.mxu0 %v1924
        %v2336 = vpop.f32.mrf.mxu0
        %v2337 = vadd.f32 %v2240, %v2336
        %v2338 = vpop.f32.mrf.mxu0
        %v2339 = vpop.f32.mrf.mxu0
        %v2340 = vadd.f32 %v2243, %v2339
        %v2341 = vpop.f32.mrf.mxu0
        %2342 = vmatprep.mubr.bf16.mxu0 %v2160
        %2343 = vmatmul.mubr.bf16.gmra.mxu0 %v1928
        %v2344 = vpop.f32.mrf.mxu0
        %v2345 = vadd.f32 %v2248, %v2344
        %v2346 = vpop.f32.mrf.mxu0
        %v2347 = vpop.f32.mrf.mxu0
        %v2348 = vadd.f32 %v2251, %v2347
        %v2349 = vpop.f32.mrf.mxu0
        %2350 = vmatprep.mubr.bf16.mxu0 %v2163
        %2351 = vmatmul.mubr.bf16.gmra.mxu0 %v1932
        %v2352 = vpop.f32.mrf.mxu0
        %v2353 = vadd.f32 %v2256, %v2352
        %v2354 = vpop.f32.mrf.mxu0
        %v2355 = vpop.f32.mrf.mxu0
        %v2356 = vadd.f32 %v2259, %v2355
        %v2357 = vpop.f32.mrf.mxu0
        %2358 = vdwg.mxu0
        %2359 = vst [vmem:[%s295] sm:$0xff] %v2297
        %2360 = vst [vmem:[%s295 + $0x8] sm:$0xff] %v2300
        %2361 = vst [vmem:[%s295 + $0x10] sm:$0xff] %v2305
        %2362 = vst [vmem:[%s295 + $0x18] sm:$0xff] %v2308
        %2363 = vst [vmem:[%s295 + $0x20] sm:$0xff] %v2313
        %2364 = vst [vmem:[%s295 + $0x28] sm:$0xff] %v2316
        %2365 = vst [vmem:[%s295 + $0x30] sm:$0xff] %v2321
        %2366 = vst [vmem:[%s295 + $0x38] sm:$0xff] %v2324
        %2367 = vst [vmem:[%s295 + $0x40] sm:$0xff] %v2329
        %2368 = vst [vmem:[%s295 + $0x48] sm:$0xff] %v2332
        %2369 = vst [vmem:[%s295 + $0x50] sm:$0xff] %v2337
        %2370 = vst [vmem:[%s295 + $0x58] sm:$0xff] %v2340
        %2371 = vst [vmem:[%s295 + $0x60] sm:$0xff] %v2345
        %2372 = vst [vmem:[%s295 + $0x68] sm:$0xff] %v2348
        %2373 = vst [vmem:[%s295 + $0x70] sm:$0xff] %v2353
        %2374 = vst [vmem:[%s295 + $0x78] sm:$0xff] %v2356
        %s2375 = smul.u32 16, %s19
        %p2376 = scmp.lt.s32.totalorder %s2375, 31
        %s2377 = scalar_select %p2376, %s2375, 31
        %s2378 = smul.addr %s2377, 8
        %s2379 = scalar_lea.vmem %s7, %s2378
        // Predicated region
        $region53: #{model_forward.1} parent=47 // pred_check
          %p2380 = pneg %p189
        $region54: #{model_forward.1} parent=47 // pred_check_branch
          %2382 = sbr.rel (%p2380) target = $region56
        $region55: #{model_forward.1} parent=47 // pred_region
          %s2383 = smul.u32 16, %s19
        $region56: #{model_forward.1} parent=47 // pred_fallthru
          _
      $region48: #{model_forward.1} parent=5 // pred_fallthru
        _
      %p2384 = scmp.le.s32.totalorder 2, %s14
      // Predicated region
      $region57: #{model_forward.1} parent=5 // pred_check
        %p2385 = pneg %p2384
      $region58: #{model_forward.1} parent=5 // pred_check_branch
        %2387 = sbr.rel (%p2385) target = $region60
      $region59: #{model_forward.1} parent=5 // pred_region
        %s2388 = ssub.s32 %s14, 2
        // Predicated region
        $region61: #{model_forward.1} parent=59 // pred_check
          %p2389 = pneg %p195
        $region62: #{model_forward.1} parent=59 // pred_check_branch
          %2391 = sbr.rel (%p2389) target = $region64
        $region63: #{model_forward.1} parent=59 // pred_region
          %s2392 = smul.u32 16, %s20
          %p2393 = scmp.lt.s32.totalorder %s2392, 31
          %s2394 = scalar_select %p2393, %s2392, 31
          %s2395 = smul.addr %s2394, 8
          %s2396 = scalar_lea.vmem %s7, %s2395
        $region64: #{model_forward.1} parent=59 // pred_fallthru
          _
      $region60: #{model_forward.1} parent=5 // pred_fallthru
        _
    $region6: #{model_forward.1} parent=1 // loop_footer
      %s18 = sadd.s32 1, %s14
    $region7: #{model_forward.1} parent=1 // loop_footer_branch
      %13 = sbr.rel target = $region3
    $region8: #{model_forward.1} parent=1 // loop_exit
      _
    %2397 = vsyncpa [#allocation3], 1
    %s2398 = scalar_lea.sflag [#allocation3], 1
    %2399 = vsyncpa %s2398, 1

</llo_original>
